<compile_context>
chip_gen: v7x
topology: tpu7x:2x2x1
jax: 0.10.0
libtpu: 0.0.40
codegen_flags: <defaults>
</compile_context>

<pallas_src>
import functools

import jax
import jax.numpy as jnp
import numpy as np
from jax import lax
from jax.experimental import pallas as pl
from jax.experimental.pallas import tpu as pltpu


def _round_up(a, b):
    return (a + b - 1) // b * b


def _sw_quantile_kernel(yt_ref, yn_ref, m_ref, thr_ref, out_ref, *, inv_scale):
    # yt_ref:  (TP, N_pad)   f32  projected values, lane dim = all nodes
    # yn_ref:  (TR, TP)      f32  projected values of this row tile (same bits)
    # m_ref:   (N_pad, B*Q)  bf16 graph membership, column (b,j) = 1 iff node in b
    # thr_ref: (1, B*Q)      f32  rank thresholds floor(q_j*(n_b-1)) + 1
    # out_ref: (TP, B*Q)     f32  output block for (i, pt); min-accumulated over rt
    rt = pl.program_id(2)
    TP = yt_ref.shape[0]

    @pl.when(rt == 0)
    def _init():
        out_ref[...] = jnp.full(out_ref.shape, jnp.inf, jnp.float32)

    y_all = yt_ref[...]                                   # (TP, N_pad)
    y_rows = yn_ref[...]                                  # (TR, TP)
    m_all = m_ref[...]                                    # (N_pad, BQ) bf16
    thr = thr_ref[...]                                    # (1, BQ)

    parts = []
    for p in range(TP):                 # small static unroll (TP <= 8)
        yp_all = y_all[p:p + 1, :]                        # (1, N_pad) lane dim = N
        yp_rows = y_rows[:, p:p + 1]                      # (TR, 1)
        # Pairwise comparison computed once, shared across all graphs/quantiles.
        le = (yp_all <= yp_rows).astype(jnp.bfloat16)     # (TR, N_pad) 0/1 exact
        # Per-(graph, quantile-column) rank counts on the MXU (f32 accum exact
        # for per-graph node counts < 2^24).
        counts = jnp.dot(le, m_all,
                         preferred_element_type=jnp.float32)   # (TR, BQ)
        # Quantile selection: min over qualifying rows of this tile.
        cand = jnp.where(counts >= thr, yp_rows, jnp.inf)      # (TR, BQ)
        parts.append(jnp.min(cand, axis=0, keepdims=True))     # (1, BQ)

    out_ref[...] = jnp.minimum(out_ref[...], jnp.concatenate(parts, axis=0))

    @pl.when(rt == pl.num_programs(2) - 1)
    def _finalize():
        out_ref[...] = out_ref[...] * inv_scale


def anisotropic_sw_encoder(x, batch, projections, num_iterations,
                           num_quantiles, num_graphs, p=2):
    N, tot = x.shape
    T1 = num_iterations + 1
    D, P = projections.shape
    assert tot == T1 * D
    Q = num_quantiles
    B = num_graphs
    BQ = B * Q
    # Exact rank counting in f32 accumulation requires counts < 2^24.
    assert N < (1 << 24)

    # --- tiling ---
    TP = min(P, 8)                                # projections per grid step
    P_pad = _round_up(P, TP)
    n_pt = P_pad // TP
    if N <= 1024:
        TR = _round_up(N, 128)                    # single row tile
    else:
        n_ceil = _round_up(N, 128)
        TR = ((8 << 20) // (2 * n_ceil)) // 128 * 128   # ~8 MiB bf16 compare tile
        TR = max(128, min(512, TR))
    N_pad = _round_up(N, TR)
    n_rt = N_pad // TR

    # --- host-side prep (cheap, one pass over the data) ---
    xf = x.astype(jnp.float32)
    projf = projections.astype(jnp.float32)
    # Hoisted projection matmul (tiny K=D, poorly shaped for the MXU).
    # HIGHEST precision keeps f32 fidelity of the order statistics.
    x3 = xf.reshape(N, T1, D)
    y = jnp.einsum('ntd,dp->tnp', x3, projf,
                   precision=lax.Precision.HIGHEST)          # (T1, N, P)
    y_pad = jnp.zeros((T1, N_pad, P_pad), jnp.float32).at[:, :N, :P].set(y)
    yt = y_pad.transpose(0, 2, 1)                            # (T1, P_pad, N_pad)
    yn = y_pad.reshape(T1, N_pad, n_pt, TP).transpose(0, 2, 1, 3)  # (T1,n_pt,N_pad,TP)

    # Membership matrix expanded to one column per (graph, quantile) output
    # column; padded node rows are all-zero.  bf16 0/1 is exact.
    batch_i = batch.astype(jnp.int32)
    col_gid = jnp.repeat(jnp.arange(B, dtype=jnp.int32), Q)          # (BQ,)
    m_nodes = (batch_i[:, None] == col_gid[None, :]).astype(jnp.bfloat16)
    m_exp = jnp.zeros((N_pad, BQ), jnp.bfloat16).at[:N].set(m_nodes)

    # Rank thresholds floor(q_j * (n_b - 1)) + 1, computed in float64 on host
    # to match the float64 numpy/torch quantile index computation exactly.
    batch_host = np.asarray(jax.device_get(batch_i)).astype(np.int64)
    nb = np.bincount(batch_host, minlength=B)[:B].astype(np.float64)  # (B,)
    q64 = np.linspace(0.0, 1.0, Q)                                    # float64
    thr_np = np.floor(q64[None, :] * (nb[:, None] - 1.0)) + 1.0       # (B, Q)
    thr = jnp.asarray(thr_np.reshape(1, BQ), dtype=jnp.float32)       # small ints, exact

    inv_scale = float((Q * P) ** (-1.0 / p))
    kernel = functools.partial(_sw_quantile_kernel, inv_scale=inv_scale)

    out = pl.pallas_call(
        kernel,
        out_shape=jax.ShapeDtypeStruct((T1, n_pt, TP, BQ), jnp.float32),
        grid=(T1, n_pt, n_rt),
        in_specs=[
            pl.BlockSpec((None, TP, N_pad), lambda i, pt, rt: (i, pt, 0)),
            pl.BlockSpec((None, None, TR, TP), lambda i, pt, rt: (i, pt, rt, 0)),
            pl.BlockSpec((N_pad, BQ), lambda i, pt, rt: (0, 0)),
            pl.BlockSpec((1, BQ), lambda i, pt, rt: (0, 0)),
        ],
        out_specs=pl.BlockSpec((None, None, TP, BQ),
                               lambda i, pt, rt: (i, pt, 0, 0)),
        compiler_params=pltpu.CompilerParams(
            dimension_semantics=("parallel", "parallel", "arbitrary"),
            vmem_limit_bytes=48 * 1024 * 1024),
    )(yt, yn, m_exp, thr)

    # (T1, n_pt, TP, B*Q) -> (B, T1*Q*P), matching torch's concat of
    # row-major-flattened (Q, P) slabs per iteration.
    out = out.reshape(T1, n_pt, TP, B, Q)
    out = out.transpose(3, 0, 4, 1, 2)                 # (B, T1, Q, n_pt, TP)
    out = out.reshape(B, T1, Q, n_pt * TP)[..., :P].reshape(B, T1 * Q * P)
    return out


def reference_forward(x, batch, projections, num_iterations,
                      num_quantiles, num_graphs, p=2):
    """Pure numpy reference reproducing the torch forward pass."""
    x = np.asarray(x, dtype=np.float32)
    batch = np.asarray(batch)
    proj = np.asarray(projections, dtype=np.float32)
    D, P = proj.shape
    Q = num_quantiles
    cw = np.linspace(0.0, 1.0, Q)
    outs = []
    for i in range(num_iterations + 1):
        xi = x[:, i * D:(i + 1) * D] @ proj
        qs = []
        for b in range(num_graphs):
            xb = xi[batch == b]
            n_b = xb.shape[0]
            srt = np.sort(xb, axis=0)
            idx = np.floor(cw * (n_b - 1)).astype(np.int64)   # 'lower' interpolation
            qs.append(srt[idx].reshape(-1))
        qi = np.stack(qs) / (Q * P) ** (1.0 / p)
        outs.append(qi)
    return np.concatenate(outs, axis=-1)


if __name__ == "__main__":
    # Small shapes consistent with the module.
    dim_features = 4        # D
    num_iterations = 2      # T  -> x has (T+1)*D columns
    num_projections = 8     # P
    num_quantiles = 5       # Q
    num_graphs = 2          # B (from `batch`)
    num_nodes = 16          # N
    p = 2

    key = jax.random.PRNGKey(0)
    kx, kp = jax.random.split(key)
    x = jax.random.normal(
        kx, (num_nodes, (num_iterations + 1) * dim_features), dtype=jnp.float32)

    # Deterministic "resample_projections": random directions, column-normalized.
    projections = jax.random.normal(kp, (dim_features, num_projections),
                                    dtype=jnp.float32)
    projections = projections / jnp.sqrt(
        jnp.sum(projections ** 2, axis=0, keepdims=True))

    # Graph assignment (sorted, as produced by PyG batching).
    batch = jnp.array([0] * 7 + [1] * 9, dtype=jnp.int32)

    out = anisotropic_sw_encoder(x, batch, projections, num_iterations,
                                 num_quantiles, num_graphs, p=p)
    out = jax.block_until_ready(out)

    ref = reference_forward(x, batch, projections, num_iterations,
                            num_quantiles, num_graphs, p=p)

    assert out.shape == (num_graphs,
                         (num_iterations + 1) * num_quantiles * num_projections)
    np.testing.assert_allclose(np.asarray(out), ref, atol=1e-5, rtol=1e-5)

    print("KERNEL_OK")
</pallas_src>

<mosaic_0001>
module attributes {stable_mosaic.version = 11 : i64} {
  func.func @_sw_quantile_kernel(%arg0: i32, %arg1: i32, %arg2: i32, %arg3: memref<1x8x128xf32, #tpu.memory_space<vmem>>, %arg4: memref<1x1x128x8xf32, #tpu.memory_space<vmem>>, %arg5: memref<128x10xbf16, #tpu.memory_space<vmem>>, %arg6: memref<1x10xf32, #tpu.memory_space<vmem>>, %arg7: memref<1x1x8x10xf32, #tpu.memory_space<vmem>>) attributes {dimension_semantics = [#tpu.dimension_semantics<parallel>, #tpu.dimension_semantics<parallel>, #tpu.dimension_semantics<arbitrary>], iteration_bounds = array<i64: 3, 1, 1>, scalar_prefetch = 0 : i64, scratch_operands = 0 : i64, tpu.core_type = #tpu.core_type<tc>, window_params = [{transform_indices = @transform_0, window_bounds = array<i64: 1, 8, 128>}, {transform_indices = @transform_1, window_bounds = array<i64: 1, 1, 128, 8>}, {pipeline_mode = #tpu.pipeline_mode<synchronous>, transform_indices = @transform_2, window_bounds = array<i64: 128, 10>}, {pipeline_mode = #tpu.pipeline_mode<synchronous>, transform_indices = @transform_3, window_bounds = array<i64: 1, 10>}, {transform_indices = @transform_4, window_bounds = array<i64: 1, 1, 8, 10>}]} {
    %c0_i32 = arith.constant 0 : i32
    %0 = arith.cmpi eq, %arg2, %c0_i32 : i32
    %1 = arith.extui %0 : i1 to i32
    %c0_i32_0 = arith.constant 0 : i32
    %2 = arith.cmpi ne, %1, %c0_i32_0 : i32
    scf.if %2 {
      %cst_44 = arith.constant 0x7F800000 : f32
      %155 = vector.broadcast %cst_44 : f32 to vector<8x10xf32>
      %c0_45 = arith.constant 0 : index
      %c0_46 = arith.constant 0 : index
      %c0_47 = arith.constant 0 : index
      %c0_48 = arith.constant 0 : index
      %156 = vector.load %arg7[%c0_45, %c0_46, %c0_47, %c0_48] : memref<1x1x8x10xf32, #tpu.memory_space<vmem>>, vector<1x1x8x10xf32>
      %157 = vector.shape_cast %156 : vector<1x1x8x10xf32> to vector<8x10xf32>
      %158 = vector.shape_cast %155 : vector<8x10xf32> to vector<1x1x8x10xf32>
      tpu.vector_store %arg7[%c0_45, %c0_46, %c0_47, %c0_48], %158 {strides = array<i32>} : memref<1x1x8x10xf32, #tpu.memory_space<vmem>>, vector<1x1x8x10xf32>,
    } else {
    }
    %c0 = arith.constant 0 : index
    %c0_1 = arith.constant 0 : index
    %c0_2 = arith.constant 0 : index
    %3 = vector.load %arg3[%c0, %c0_1, %c0_2] : memref<1x8x128xf32, #tpu.memory_space<vmem>>, vector<1x8x128xf32>
    %4 = vector.shape_cast %3 : vector<1x8x128xf32> to vector<8x128xf32>
    %c0_3 = arith.constant 0 : index
    %c0_4 = arith.constant 0 : index
    %c0_5 = arith.constant 0 : index
    %c0_6 = arith.constant 0 : index
    %5 = vector.load %arg4[%c0_3, %c0_4, %c0_5, %c0_6] : memref<1x1x128x8xf32, #tpu.memory_space<vmem>>, vector<1x1x128x8xf32>
    %6 = vector.shape_cast %5 : vector<1x1x128x8xf32> to vector<128x8xf32>
    %c0_7 = arith.constant 0 : index
    %c0_8 = arith.constant 0 : index
    %7 = vector.load %arg5[%c0_7, %c0_8] : memref<128x10xbf16, #tpu.memory_space<vmem>>, vector<128x10xbf16>
    %c0_9 = arith.constant 0 : index
    %c0_10 = arith.constant 0 : index
    %8 = vector.load %arg6[%c0_9, %c0_10] : memref<1x10xf32, #tpu.memory_space<vmem>>, vector<1x10xf32>
    %9 = vector.extract_strided_slice %4 {offsets = [0, 0], sizes = [1, 128], strides = [1, 1]} : vector<8x128xf32> to vector<1x128xf32>
    %10 = vector.extract_strided_slice %6 {offsets = [0, 0], sizes = [128, 1], strides = [1, 1]} : vector<128x8xf32> to vector<128x1xf32>
    %11 = vector.broadcast %9 : vector<1x128xf32> to vector<128x128xf32>
    %12 = vector.broadcast %10 : vector<128x1xf32> to vector<128x128xf32>
    %13 = arith.cmpf ole, %11, %12 : vector<128x128xf32>
    %14 = arith.extui %13 : vector<128x128xi1> to vector<128x128xi32>
    %15 = arith.sitofp %14 : vector<128x128xi32> to vector<128x128xf32>
    %16 = arith.truncf %15 : vector<128x128xf32> to vector<128x128xbf16>
    %cst = arith.constant dense<0.000000e+00> : vector<128x10xf32>
    %17 = tpu.matmul %16, %7, %cst {dimension_numbers = #tpu.dot_dimension_numbers<[1], [0], [0], [1], [0, 0, 1, 1], [], []>} : vector<128x128xbf16>, vector<128x10xbf16>, vector<128x10xf32> -> vector<128x10xf32>
    %18 = vector.broadcast %8 : vector<1x10xf32> to vector<128x10xf32>
    %19 = arith.cmpf oge, %17, %18 : vector<128x10xf32>
    %cst_11 = arith.constant 0x7F800000 : f32
    %20 = vector.shape_cast %10 : vector<128x1xf32> to vector<128x1xf32>
    %21 = vector.broadcast %20 : vector<128x1xf32> to vector<128x10xf32>
    %22 = vector.broadcast %cst_11 : f32 to vector<128x10xf32>
    %23 = arith.select %19, %21, %22 : vector<128x10xi1>, vector<128x10xf32>
    %cst_12 = arith.constant dense<0x7F800000> : vector<10xf32>
    %24 = vector.multi_reduction <minimumf>, %23, %cst_12 [0] : vector<128x10xf32> to vector<10xf32>
    %25 = vector.shape_cast %24 : vector<10xf32> to vector<1x10xf32>
    %26 = vector.extract_strided_slice %4 {offsets = [1, 0], sizes = [1, 128], strides = [1, 1]} : vector<8x128xf32> to vector<1x128xf32>
    %27 = vector.extract_strided_slice %6 {offsets = [0, 1], sizes = [128, 1], strides = [1, 1]} : vector<128x8xf32> to vector<128x1xf32>
    %28 = vector.broadcast %26 : vector<1x128xf32> to vector<128x128xf32>
    %29 = vector.broadcast %27 : vector<128x1xf32> to vector<128x128xf32>
    %30 = arith.cmpf ole, %28, %29 : vector<128x128xf32>
    %31 = arith.extui %30 : vector<128x128xi1> to vector<128x128xi32>
    %32 = arith.sitofp %31 : vector<128x128xi32> to vector<128x128xf32>
    %33 = arith.truncf %32 : vector<128x128xf32> to vector<128x128xbf16>
    %cst_13 = arith.constant dense<0.000000e+00> : vector<128x10xf32>
    %34 = tpu.matmul %33, %7, %cst_13 {dimension_numbers = #tpu.dot_dimension_numbers<[1], [0], [0], [1], [0, 0, 1, 1], [], []>} : vector<128x128xbf16>, vector<128x10xbf16>, vector<128x10xf32> -> vector<128x10xf32>
    %35 = vector.broadcast %8 : vector<1x10xf32> to vector<128x10xf32>
    %36 = arith.cmpf oge, %34, %35 : vector<128x10xf32>
    %cst_14 = arith.constant 0x7F800000 : f32
    %37 = vector.shape_cast %27 : vector<128x1xf32> to vector<128x1xf32>
    %38 = vector.broadcast %37 : vector<128x1xf32> to vector<128x10xf32>
    %39 = vector.broadcast %cst_14 : f32 to vector<128x10xf32>
    %40 = arith.select %36, %38, %39 : vector<128x10xi1>, vector<128x10xf32>
    %cst_15 = arith.constant dense<0x7F800000> : vector<10xf32>
    %41 = vector.multi_reduction <minimumf>, %40, %cst_15 [0] : vector<128x10xf32> to vector<10xf32>
    %42 = vector.shape_cast %41 : vector<10xf32> to vector<1x10xf32>
    %43 = vector.extract_strided_slice %4 {offsets = [2, 0], sizes = [1, 128], strides = [1, 1]} : vector<8x128xf32> to vector<1x128xf32>
    %44 = vector.extract_strided_slice %6 {offsets = [0, 2], sizes = [128, 1], strides = [1, 1]} : vector<128x8xf32> to vector<128x1xf32>
    %45 = vector.broadcast %43 : vector<1x128xf32> to vector<128x128xf32>
    %46 = vector.broadcast %44 : vector<128x1xf32> to vector<128x128xf32>
    %47 = arith.cmpf ole, %45, %46 : vector<128x128xf32>
    %48 = arith.extui %47 : vector<128x128xi1> to vector<128x128xi32>
    %49 = arith.sitofp %48 : vector<128x128xi32> to vector<128x128xf32>
    %50 = arith.truncf %49 : vector<128x128xf32> to vector<128x128xbf16>
    %cst_16 = arith.constant dense<0.000000e+00> : vector<128x10xf32>
    %51 = tpu.matmul %50, %7, %cst_16 {dimension_numbers = #tpu.dot_dimension_numbers<[1], [0], [0], [1], [0, 0, 1, 1], [], []>} : vector<128x128xbf16>, vector<128x10xbf16>, vector<128x10xf32> -> vector<128x10xf32>
    %52 = vector.broadcast %8 : vector<1x10xf32> to vector<128x10xf32>
    %53 = arith.cmpf oge, %51, %52 : vector<128x10xf32>
    %cst_17 = arith.constant 0x7F800000 : f32
    %54 = vector.shape_cast %44 : vector<128x1xf32> to vector<128x1xf32>
    %55 = vector.broadcast %54 : vector<128x1xf32> to vector<128x10xf32>
    %56 = vector.broadcast %cst_17 : f32 to vector<128x10xf32>
    %57 = arith.select %53, %55, %56 : vector<128x10xi1>, vector<128x10xf32>
    %cst_18 = arith.constant dense<0x7F800000> : vector<10xf32>
    %58 = vector.multi_reduction <minimumf>, %57, %cst_18 [0] : vector<128x10xf32> to vector<10xf32>
    %59 = vector.shape_cast %58 : vector<10xf32> to vector<1x10xf32>
    %60 = vector.extract_strided_slice %4 {offsets = [3, 0], sizes = [1, 128], strides = [1, 1]} : vector<8x128xf32> to vector<1x128xf32>
    %61 = vector.extract_strided_slice %6 {offsets = [0, 3], sizes = [128, 1], strides = [1, 1]} : vector<128x8xf32> to vector<128x1xf32>
    %62 = vector.broadcast %60 : vector<1x128xf32> to vector<128x128xf32>
    %63 = vector.broadcast %61 : vector<128x1xf32> to vector<128x128xf32>
    %64 = arith.cmpf ole, %62, %63 : vector<128x128xf32>
    %65 = arith.extui %64 : vector<128x128xi1> to vector<128x128xi32>
    %66 = arith.sitofp %65 : vector<128x128xi32> to vector<128x128xf32>
    %67 = arith.truncf %66 : vector<128x128xf32> to vector<128x128xbf16>
    %cst_19 = arith.constant dense<0.000000e+00> : vector<128x10xf32>
    %68 = tpu.matmul %67, %7, %cst_19 {dimension_numbers = #tpu.dot_dimension_numbers<[1], [0], [0], [1], [0, 0, 1, 1], [], []>} : vector<128x128xbf16>, vector<128x10xbf16>, vector<128x10xf32> -> vector<128x10xf32>
    %69 = vector.broadcast %8 : vector<1x10xf32> to vector<128x10xf32>
    %70 = arith.cmpf oge, %68, %69 : vector<128x10xf32>
    %cst_20 = arith.constant 0x7F800000 : f32
    %71 = vector.shape_cast %61 : vector<128x1xf32> to vector<128x1xf32>
    %72 = vector.broadcast %71 : vector<128x1xf32> to vector<128x10xf32>
    %73 = vector.broadcast %cst_20 : f32 to vector<128x10xf32>
    %74 = arith.select %70, %72, %73 : vector<128x10xi1>, vector<128x10xf32>
    %cst_21 = arith.constant dense<0x7F800000> : vector<10xf32>
    %75 = vector.multi_reduction <minimumf>, %74, %cst_21 [0] : vector<128x10xf32> to vector<10xf32>
    %76 = vector.shape_cast %75 : vector<10xf32> to vector<1x10xf32>
    %77 = vector.extract_strided_slice %4 {offsets = [4, 0], sizes = [1, 128], strides = [1, 1]} : vector<8x128xf32> to vector<1x128xf32>
    %78 = vector.extract_strided_slice %6 {offsets = [0, 4], sizes = [128, 1], strides = [1, 1]} : vector<128x8xf32> to vector<128x1xf32>
    %79 = vector.broadcast %77 : vector<1x128xf32> to vector<128x128xf32>
    %80 = vector.broadcast %78 : vector<128x1xf32> to vector<128x128xf32>
    %81 = arith.cmpf ole, %79, %80 : vector<128x128xf32>
    %82 = arith.extui %81 : vector<128x128xi1> to vector<128x128xi32>
    %83 = arith.sitofp %82 : vector<128x128xi32> to vector<128x128xf32>
    %84 = arith.truncf %83 : vector<128x128xf32> to vector<128x128xbf16>
    %cst_22 = arith.constant dense<0.000000e+00> : vector<128x10xf32>
    %85 = tpu.matmul %84, %7, %cst_22 {dimension_numbers = #tpu.dot_dimension_numbers<[1], [0], [0], [1], [0, 0, 1, 1], [], []>} : vector<128x128xbf16>, vector<128x10xbf16>, vector<128x10xf32> -> vector<128x10xf32>
    %86 = vector.broadcast %8 : vector<1x10xf32> to vector<128x10xf32>
    %87 = arith.cmpf oge, %85, %86 : vector<128x10xf32>
    %cst_23 = arith.constant 0x7F800000 : f32
    %88 = vector.shape_cast %78 : vector<128x1xf32> to vector<128x1xf32>
    %89 = vector.broadcast %88 : vector<128x1xf32> to vector<128x10xf32>
    %90 = vector.broadcast %cst_23 : f32 to vector<128x10xf32>
    %91 = arith.select %87, %89, %90 : vector<128x10xi1>, vector<128x10xf32>
    %cst_24 = arith.constant dense<0x7F800000> : vector<10xf32>
    %92 = vector.multi_reduction <minimumf>, %91, %cst_24 [0] : vector<128x10xf32> to vector<10xf32>
    %93 = vector.shape_cast %92 : vector<10xf32> to vector<1x10xf32>
    %94 = vector.extract_strided_slice %4 {offsets = [5, 0], sizes = [1, 128], strides = [1, 1]} : vector<8x128xf32> to vector<1x128xf32>
    %95 = vector.extract_strided_slice %6 {offsets = [0, 5], sizes = [128, 1], strides = [1, 1]} : vector<128x8xf32> to vector<128x1xf32>
    %96 = vector.broadcast %94 : vector<1x128xf32> to vector<128x128xf32>
    %97 = vector.broadcast %95 : vector<128x1xf32> to vector<128x128xf32>
    %98 = arith.cmpf ole, %96, %97 : vector<128x128xf32>
    %99 = arith.extui %98 : vector<128x128xi1> to vector<128x128xi32>
    %100 = arith.sitofp %99 : vector<128x128xi32> to vector<128x128xf32>
    %101 = arith.truncf %100 : vector<128x128xf32> to vector<128x128xbf16>
    %cst_25 = arith.constant dense<0.000000e+00> : vector<128x10xf32>
    %102 = tpu.matmul %101, %7, %cst_25 {dimension_numbers = #tpu.dot_dimension_numbers<[1], [0], [0], [1], [0, 0, 1, 1], [], []>} : vector<128x128xbf16>, vector<128x10xbf16>, vector<128x10xf32> -> vector<128x10xf32>
    %103 = vector.broadcast %8 : vector<1x10xf32> to vector<128x10xf32>
    %104 = arith.cmpf oge, %102, %103 : vector<128x10xf32>
    %cst_26 = arith.constant 0x7F800000 : f32
    %105 = vector.shape_cast %95 : vector<128x1xf32> to vector<128x1xf32>
    %106 = vector.broadcast %105 : vector<128x1xf32> to vector<128x10xf32>
    %107 = vector.broadcast %cst_26 : f32 to vector<128x10xf32>
    %108 = arith.select %104, %106, %107 : vector<128x10xi1>, vector<128x10xf32>
    %cst_27 = arith.constant dense<0x7F800000> : vector<10xf32>
    %109 = vector.multi_reduction <minimumf>, %108, %cst_27 [0] : vector<128x10xf32> to vector<10xf32>
    %110 = vector.shape_cast %109 : vector<10xf32> to vector<1x10xf32>
    %111 = vector.extract_strided_slice %4 {offsets = [6, 0], sizes = [1, 128], strides = [1, 1]} : vector<8x128xf32> to vector<1x128xf32>
    %112 = vector.extract_strided_slice %6 {offsets = [0, 6], sizes = [128, 1], strides = [1, 1]} : vector<128x8xf32> to vector<128x1xf32>
    %113 = vector.broadcast %111 : vector<1x128xf32> to vector<128x128xf32>
    %114 = vector.broadcast %112 : vector<128x1xf32> to vector<128x128xf32>
    %115 = arith.cmpf ole, %113, %114 : vector<128x128xf32>
    %116 = arith.extui %115 : vector<128x128xi1> to vector<128x128xi32>
    %117 = arith.sitofp %116 : vector<128x128xi32> to vector<128x128xf32>
    %118 = arith.truncf %117 : vector<128x128xf32> to vector<128x128xbf16>
    %cst_28 = arith.constant dense<0.000000e+00> : vector<128x10xf32>
    %119 = tpu.matmul %118, %7, %cst_28 {dimension_numbers = #tpu.dot_dimension_numbers<[1], [0], [0], [1], [0, 0, 1, 1], [], []>} : vector<128x128xbf16>, vector<128x10xbf16>, vector<128x10xf32> -> vector<128x10xf32>
    %120 = vector.broadcast %8 : vector<1x10xf32> to vector<128x10xf32>
    %121 = arith.cmpf oge, %119, %120 : vector<128x10xf32>
    %cst_29 = arith.constant 0x7F800000 : f32
    %122 = vector.shape_cast %112 : vector<128x1xf32> to vector<128x1xf32>
    %123 = vector.broadcast %122 : vector<128x1xf32> to vector<128x10xf32>
    %124 = vector.broadcast %cst_29 : f32 to vector<128x10xf32>
    %125 = arith.select %121, %123, %124 : vector<128x10xi1>, vector<128x10xf32>
    %cst_30 = arith.constant dense<0x7F800000> : vector<10xf32>
    %126 = vector.multi_reduction <minimumf>, %125, %cst_30 [0] : vector<128x10xf32> to vector<10xf32>
    %127 = vector.shape_cast %126 : vector<10xf32> to vector<1x10xf32>
    %128 = vector.extract_strided_slice %4 {offsets = [7, 0], sizes = [1, 128], strides = [1, 1]} : vector<8x128xf32> to vector<1x128xf32>
    %129 = vector.extract_strided_slice %6 {offsets = [0, 7], sizes = [128, 1], strides = [1, 1]} : vector<128x8xf32> to vector<128x1xf32>
    %130 = vector.broadcast %128 : vector<1x128xf32> to vector<128x128xf32>
    %131 = vector.broadcast %129 : vector<128x1xf32> to vector<128x128xf32>
    %132 = arith.cmpf ole, %130, %131 : vector<128x128xf32>
    %133 = arith.extui %132 : vector<128x128xi1> to vector<128x128xi32>
    %134 = arith.sitofp %133 : vector<128x128xi32> to vector<128x128xf32>
    %135 = arith.truncf %134 : vector<128x128xf32> to vector<128x128xbf16>
    %cst_31 = arith.constant dense<0.000000e+00> : vector<128x10xf32>
    %136 = tpu.matmul %135, %7, %cst_31 {dimension_numbers = #tpu.dot_dimension_numbers<[1], [0], [0], [1], [0, 0, 1, 1], [], []>} : vector<128x128xbf16>, vector<128x10xbf16>, vector<128x10xf32> -> vector<128x10xf32>
    %137 = vector.broadcast %8 : vector<1x10xf32> to vector<128x10xf32>
    %138 = arith.cmpf oge, %136, %137 : vector<128x10xf32>
    %cst_32 = arith.constant 0x7F800000 : f32
    %139 = vector.shape_cast %129 : vector<128x1xf32> to vector<128x1xf32>
    %140 = vector.broadcast %139 : vector<128x1xf32> to vector<128x10xf32>
    %141 = vector.broadcast %cst_32 : f32 to vector<128x10xf32>
    %142 = arith.select %138, %140, %141 : vector<128x10xi1>, vector<128x10xf32>
    %cst_33 = arith.constant dense<0x7F800000> : vector<10xf32>
    %143 = vector.multi_reduction <minimumf>, %142, %cst_33 [0] : vector<128x10xf32> to vector<10xf32>
    %144 = vector.shape_cast %143 : vector<10xf32> to vector<1x10xf32>
    %c0_34 = arith.constant 0 : index
    %c0_35 = arith.constant 0 : index
    %c0_36 = arith.constant 0 : index
    %c0_37 = arith.constant 0 : index
    %145 = vector.load %arg7[%c0_34, %c0_35, %c0_36, %c0_37] : memref<1x1x8x10xf32, #tpu.memory_space<vmem>>, vector<1x1x8x10xf32>
    %146 = vector.shape_cast %145 : vector<1x1x8x10xf32> to vector<8x10xf32>
    %147 = tpu.concatenate %25, %42, %59, %76, %93, %110, %127, %144 in 0 : vector<1x10xf32>, vector<1x10xf32>, vector<1x10xf32>, vector<1x10xf32>, vector<1x10xf32>, vector<1x10xf32>, vector<1x10xf32>, vector<1x10xf32> -> vector<8x10xf32>
    %148 = arith.minimumf %146, %147 : vector<8x10xf32>
    %c0_38 = arith.constant 0 : index
    %c0_39 = arith.constant 0 : index
    %c0_40 = arith.constant 0 : index
    %c0_41 = arith.constant 0 : index
    %149 = vector.load %arg7[%c0_38, %c0_39, %c0_40, %c0_41] : memref<1x1x8x10xf32, #tpu.memory_space<vmem>>, vector<1x1x8x10xf32>
    %150 = vector.shape_cast %149 : vector<1x1x8x10xf32> to vector<8x10xf32>
    %151 = vector.shape_cast %148 : vector<8x10xf32> to vector<1x1x8x10xf32>
    tpu.vector_store %arg7[%c0_38, %c0_39, %c0_40, %c0_41], %151 {strides = array<i32>} : memref<1x1x8x10xf32, #tpu.memory_space<vmem>>, vector<1x1x8x10xf32>,
    %c0_i32_42 = arith.constant 0 : i32
    %152 = arith.cmpi eq, %arg2, %c0_i32_42 : i32
    %153 = arith.extui %152 : i1 to i32
    %c0_i32_43 = arith.constant 0 : i32
    %154 = arith.cmpi ne, %153, %c0_i32_43 : i32
    scf.if %154 {
      %c0_44 = arith.constant 0 : index
      %c0_45 = arith.constant 0 : index
      %c0_46 = arith.constant 0 : index
      %c0_47 = arith.constant 0 : index
      %155 = vector.load %arg7[%c0_44, %c0_45, %c0_46, %c0_47] : memref<1x1x8x10xf32, #tpu.memory_space<vmem>>, vector<1x1x8x10xf32>
      %156 = vector.shape_cast %155 : vector<1x1x8x10xf32> to vector<8x10xf32>
      %cst_48 = arith.constant 0.158113882 : f32
      %157 = vector.broadcast %cst_48 : f32 to vector<8x10xf32>
      %158 = arith.mulf %156, %157 : vector<8x10xf32>
      %c0_49 = arith.constant 0 : index
      %c0_50 = arith.constant 0 : index
      %c0_51 = arith.constant 0 : index
      %c0_52 = arith.constant 0 : index
      %159 = vector.load %arg7[%c0_49, %c0_50, %c0_51, %c0_52] : memref<1x1x8x10xf32, #tpu.memory_space<vmem>>, vector<1x1x8x10xf32>
      %160 = vector.shape_cast %159 : vector<1x1x8x10xf32> to vector<8x10xf32>
      %161 = vector.shape_cast %158 : vector<8x10xf32> to vector<1x1x8x10xf32>
      tpu.vector_store %arg7[%c0_49, %c0_50, %c0_51, %c0_52], %161 {strides = array<i32>} : memref<1x1x8x10xf32, #tpu.memory_space<vmem>>, vector<1x1x8x10xf32>,
    } else {
    }
    return
  }
  func.func @transform_0(%arg0: i32, %arg1: i32, %arg2: i32) -> (i32, i32, i32) {
    %c0_i32 = arith.constant 0 : i32
    %c0_i32_0 = arith.constant 0 : i32
    return %arg0, %arg1, %c0_i32 : i32, i32, i32
  }
  func.func @transform_1(%arg0: i32, %arg1: i32, %arg2: i32) -> (i32, i32, i32, i32) {
    %c0_i32 = arith.constant 0 : i32
    %c0_i32_0 = arith.constant 0 : i32
    return %arg0, %arg1, %arg2, %c0_i32 : i32, i32, i32, i32
  }
  func.func @transform_2(%arg0: i32, %arg1: i32, %arg2: i32) -> (i32, i32) {
    %c0_i32 = arith.constant 0 : i32
    %c0_i32_0 = arith.constant 0 : i32
    %c0_i32_1 = arith.constant 0 : i32
    return %c0_i32, %c0_i32_0 : i32, i32
  }
  func.func @transform_3(%arg0: i32, %arg1: i32, %arg2: i32) -> (i32, i32) {
    %c0_i32 = arith.constant 0 : i32
    %c0_i32_0 = arith.constant 0 : i32
    %c0_i32_1 = arith.constant 0 : i32
    return %c0_i32, %c0_i32_0 : i32, i32
  }
  func.func @transform_4(%arg0: i32, %arg1: i32, %arg2: i32) -> (i32, i32, i32, i32) {
    %c0_i32 = arith.constant 0 : i32
    %c0_i32_0 = arith.constant 0 : i32
    %c0_i32_1 = arith.constant 0 : i32
    return %arg0, %arg1, %c0_i32, %c0_i32_0 : i32, i32, i32, i32
  }
}

</mosaic_0001>

<llo_original>
// kernel: tpu_custom_call.1
$region0: #{tpu_custom_call.1}
  #allocation0 [shape = 'u32[]', space=smem, size = 0x4, offset = 0x4, fixed_abs, tag = 'smem constant byte address 0x4 - core index']
  #allocation1 [shape = 'u32[144,128]{1,0:T(1,128)}', space=vmem, size = 0x12000, scoped, tag = 'internal scratch']
  %s0 = inlined_call_operand.vmem [shape: f32[3,8,128], index: 0, kind: input, shape index: {}]
  %s1 = inlined_call_operand.vmem [shape: f32[3,1,128,8], index: 1, kind: input, shape index: {}]
  %s2 = inlined_call_operand.vmem [shape: bf16[128,10], index: 2, kind: input, shape index: {}]
  %s3 = inlined_call_operand.vmem [shape: f32[1,10], index: 3, kind: input, shape index: {}]
  %s4 = inlined_call_operand.hbm [shape: f32[3,1,8,10], index: 4, kind: output, shape index: {}]
  %s5 = sld [smem:[#allocation0]]
  $region57: #{tpu_custom_call.1} parent=0
    _
  %s7 = ssub.s32 1, %s5
  %s8 = scalar_select 0, %s7, %s5
  $region1: #{tpu_custom_call.1} parent=0
    #allocation2 [shape = 'u8[8192]{0}', space=vmem, size = 0x2000, scoped, tag = 'output window, operand 0']
    #allocation3 [shape = 's32[2]{0}', space=sflag, size = 0x8, scoped, tag = 'scoped memory for tpu_custom_call.1']
    %9 = vsyncpa [#allocation3], 0
    %s10 = scalar_lea.sflag [#allocation3], 1
    %11 = vsyncpa %s10, 0
    loop: start=0, step=1, limit=5
    $region2: #{tpu_custom_call.1} parent=1 // loop_pre_header
      _
    $region3: #{tpu_custom_call.1} parent=1 // loop_header
      %s13 = sphi 0, %s17
      %p14 = scmp.ge.s32.totalorder %s13, 5
      %s20 = sphi 0, %s39
      %s21 = sphi 0, %s35
      %s22 = sphi 0, %s31
      %s23 = sphi 0, %s20
      %s24 = sphi 0, %s21
      %s25 = sphi 0, %s22
      %s26 = sphi 0, %s23
      %s27 = sphi 0, %s24
      %s28 = sphi 0, %s25
      %s44 = sphi 0, %s46
      %s47 = sphi 0, %s44
      %s48 = sphi 0, %s47
      %s64 = sphi 0, %s48
      %s74 = sphi 0, %s76
      %s77 = sphi 0, %s74
      %s78 = sphi 0, %s77
      %s94 = sphi 0, %s78
      %s98 = sphi 0, %s98
      %s100 = sphi 0, %s98
      %s101 = sphi 0, %s100
      %s115 = sphi 0, %s101
      %s119 = sphi 0, %s119
      %s121 = sphi 0, %s119
      %s122 = sphi 0, %s121
      %s136 = sphi 0, %s122
      %s144 = sphi 0, %s146
      %s147 = sphi 0, %s144
      %s148 = sphi 0, %s147
      %s164 = sphi 0, %s148
    $region4: #{tpu_custom_call.1} parent=1 // loop_header_branch
      %16 = sbr.rel (%p14) target = $region8
    $region5: #{tpu_custom_call.1} parent=1 // loop_body
      %s18 = ssub.s32 %s13, 1
      %s19 = ssub.s32 %s13, 2
      %s29 = sadd.s32 1, %s22
      %p30 = scmp.ge.s32.totalorder %s29, 1
      %s31 = scalar_select %p30, 0, %s29
      %s32 = sadd.s32 1, %s21
      %s33 = scalar_select %p30, %s32, %s21
      %p34 = scmp.ge.s32.totalorder %s33, 1
      %s35 = scalar_select %p34, 0, %s33
      %s36 = sadd.s32 1, %s20
      %s37 = scalar_select %p34, %s36, %s20
      %p38 = scmp.ge.s32.totalorder %s37, 3
      %s39 = scalar_select %p38, 0, %s37
      %s40 = ssub.s32 %s20, %s39
      %s41 = ssub.s32 %s21, %s35
      %s42 = sor.u32 %s40, %s41
      %p43 = scmp.eq.s32.totalorder %s42, 0
      %s45 = sadd.s32 %s44, 1
      %s46 = scalar_select %p43, %s44, %s45
      %p49 = pneg %p43
      %p50 = scmp.eq.s32.totalorder %s13, 2
      %p51 = por %p49, %p50
      %p52 = scmp.ne.s32.totalorder %s44, %s47
      %p53 = scmp.eq.s32.totalorder %s13, 0
      %p54 = por %p52, %p53
      %p55 = scmp.ne.s32.totalorder %s44, %s47
      %p56 = scmp.eq.s32.totalorder %s18, 2
      %p57 = por %p55, %p56
      %p58 = scmp.ne.s32.totalorder %s47, %s48
      %p59 = scmp.eq.s32.totalorder %s18, 0
      %p60 = por %p58, %p59
      %p61 = scmp.ne.s32.totalorder %s47, %s48
      %p62 = scmp.eq.s32.totalorder %s19, 2
      %p63 = por %p61, %p62
      %p65 = scmp.ne.s32.totalorder %s48, %s64
      %p66 = scmp.eq.s32.totalorder %s19, 0
      %p67 = por %p65, %p66
      %s68 = ssub.s32 %s20, %s39
      %s69 = ssub.s32 %s21, %s35
      %s70 = sor.u32 %s68, %s69
      %s71 = ssub.s32 %s22, %s31
      %s72 = sor.u32 %s70, %s71
      %p73 = scmp.eq.s32.totalorder %s72, 0
      %s75 = sadd.s32 %s74, 1
      %s76 = scalar_select %p73, %s74, %s75
      %p79 = pneg %p73
      %p80 = scmp.eq.s32.totalorder %s13, 2
      %p81 = por %p79, %p80
      %p82 = scmp.ne.s32.totalorder %s74, %s77
      %p83 = scmp.eq.s32.totalorder %s13, 0
      %p84 = por %p82, %p83
      %p85 = scmp.ne.s32.totalorder %s74, %s77
      %p86 = scmp.eq.s32.totalorder %s18, 2
      %p87 = por %p85, %p86
      %p88 = scmp.ne.s32.totalorder %s77, %s78
      %p89 = scmp.eq.s32.totalorder %s18, 0
      %p90 = por %p88, %p89
      %p91 = scmp.ne.s32.totalorder %s77, %s78
      %p92 = scmp.eq.s32.totalorder %s19, 2
      %p93 = por %p91, %p92
      %p95 = scmp.ne.s32.totalorder %s78, %s94
      %p96 = scmp.eq.s32.totalorder %s19, 0
      %p97 = por %p95, %p96
      %s99 = sadd.s32 %s98, 1
      %p102 = scmp.eq.s32.totalorder %s13, 2
      %p103 = scmp.ne.s32.totalorder %s98, %s100
      %p104 = scmp.eq.s32.totalorder %s13, 0
      %p105 = por %p103, %p104
      %p106 = scmp.ne.s32.totalorder %s98, %s100
      %p107 = scmp.eq.s32.totalorder %s18, 2
      %p108 = por %p106, %p107
      %p109 = scmp.ne.s32.totalorder %s100, %s101
      %p110 = scmp.eq.s32.totalorder %s18, 0
      %p111 = por %p109, %p110
      %p112 = scmp.ne.s32.totalorder %s100, %s101
      %p113 = scmp.eq.s32.totalorder %s19, 2
      %p114 = por %p112, %p113
      %p116 = scmp.ne.s32.totalorder %s101, %s115
      %p117 = scmp.eq.s32.totalorder %s19, 0
      %p118 = por %p116, %p117
      %s120 = sadd.s32 %s119, 1
      %p123 = scmp.eq.s32.totalorder %s13, 2
      %p124 = scmp.ne.s32.totalorder %s119, %s121
      %p125 = scmp.eq.s32.totalorder %s13, 0
      %p126 = por %p124, %p125
      %p127 = scmp.ne.s32.totalorder %s119, %s121
      %p128 = scmp.eq.s32.totalorder %s18, 2
      %p129 = por %p127, %p128
      %p130 = scmp.ne.s32.totalorder %s121, %s122
      %p131 = scmp.eq.s32.totalorder %s18, 0
      %p132 = por %p130, %p131
      %p133 = scmp.ne.s32.totalorder %s121, %s122
      %p134 = scmp.eq.s32.totalorder %s19, 2
      %p135 = por %p133, %p134
      %p137 = scmp.ne.s32.totalorder %s122, %s136
      %p138 = scmp.eq.s32.totalorder %s19, 0
      %p139 = por %p137, %p138
      %s140 = ssub.s32 %s20, %s39
      %s141 = ssub.s32 %s21, %s35
      %s142 = sor.u32 %s140, %s141
      %p143 = scmp.eq.s32.totalorder %s142, 0
      %s145 = sadd.s32 %s144, 1
      %s146 = scalar_select %p143, %s144, %s145
      %p149 = pneg %p143
      %p150 = scmp.eq.s32.totalorder %s13, 2
      %p151 = por %p149, %p150
      %p152 = scmp.ne.s32.totalorder %s144, %s147
      %p153 = scmp.eq.s32.totalorder %s13, 0
      %p154 = por %p152, %p153
      %p155 = scmp.ne.s32.totalorder %s144, %s147
      %p156 = scmp.eq.s32.totalorder %s18, 2
      %p157 = por %p155, %p156
      %p158 = scmp.ne.s32.totalorder %s147, %s148
      %p159 = scmp.eq.s32.totalorder %s18, 0
      %p160 = por %p158, %p159
      %p161 = scmp.ne.s32.totalorder %s147, %s148
      %p162 = scmp.eq.s32.totalorder %s19, 2
      %p163 = por %p161, %p162
      %p165 = scmp.ne.s32.totalorder %s148, %s164
      %p166 = scmp.eq.s32.totalorder %s19, 0
      %p167 = por %p165, %p166
      %p168 = scmp.le.s32.totalorder 1, %s13
      %p169 = scmp.lt.s32.totalorder %s13, 4
      %p170 = pnand %p168, %p169
      %p171 = pneg %p170
      // Predicated region
      $region9: #{tpu_custom_call.1} parent=5 // pred_check
        _
      $region10: #{tpu_custom_call.1} parent=5 // pred_check_branch
        %173 = sbr.rel (%p170) target = $region12
      $region11: #{tpu_custom_call.1} parent=5 // pred_region
        %s174 = ssub.s32 %s13, 1
        // Predicated region
        $region13: #{tpu_custom_call.1} parent=11 // pred_check
          %p175 = pneg %p111
        $region14: #{tpu_custom_call.1} parent=11 // pred_check_branch
          %177 = sbr.rel (%p175) target = $region16
        $region15: #{tpu_custom_call.1} parent=11 // pred_region
          _
        $region16: #{tpu_custom_call.1} parent=11 // pred_fallthru
          _
        // Predicated region
        $region17: #{tpu_custom_call.1} parent=11 // pred_check
          %p178 = pneg %p132
        $region18: #{tpu_custom_call.1} parent=11 // pred_check_branch
          %180 = sbr.rel (%p178) target = $region20
        $region19: #{tpu_custom_call.1} parent=11 // pred_region
          _
        $region20: #{tpu_custom_call.1} parent=11 // pred_fallthru
          _
      $region12: #{tpu_custom_call.1} parent=5 // pred_fallthru
        _
      %p181 = scmp.lt.s32.totalorder %s13, 3
      // Predicated region
      $region21: #{tpu_custom_call.1} parent=5 // pred_check
        %p182 = pneg %p181
      $region22: #{tpu_custom_call.1} parent=5 // pred_check_branch
        %184 = sbr.rel (%p182) target = $region24
      $region23: #{tpu_custom_call.1} parent=5 // pred_region
        // Predicated region
        $region25: #{tpu_custom_call.1} parent=23 // pred_check
          %p185 = pneg %p54
        $region26: #{tpu_custom_call.1} parent=23 // pred_check_branch
          %187 = sbr.rel (%p185) target = $region28
        $region27: #{tpu_custom_call.1} parent=23 // pred_region
          %p188 = scmp.lt.s32.totalorder %s20, 2
          %s189 = scalar_select %p188, %s20, 2
          %p190 = scmp.lt.s32.totalorder %s21, 0
          %s191 = scalar_select %p190, %s21, 0
          %s192 = sadd.s32 %s191, %s189
          %s193 = smul.addr %s192, 8
          %s194 = scalar_lea.vmem %s0, %s193
        $region28: #{tpu_custom_call.1} parent=23 // pred_fallthru
          _
        // Predicated region
        $region29: #{tpu_custom_call.1} parent=23 // pred_check
          %p195 = pneg %p84
        $region30: #{tpu_custom_call.1} parent=23 // pred_check_branch
          %197 = sbr.rel (%p195) target = $region32
        $region31: #{tpu_custom_call.1} parent=23 // pred_region
          %s198 = smul.u32 16, %s22
          %p199 = scmp.lt.s32.totalorder %s20, 2
          %s200 = scalar_select %p199, %s20, 2
          %p201 = scmp.lt.s32.totalorder %s21, 0
          %s202 = scalar_select %p201, %s21, 0
          %p203 = scmp.lt.s32.totalorder %s198, 15
          %s204 = scalar_select %p203, %s198, 15
          %s205 = smul.addr %s202, 16
          %s206 = sadd.s32 %s204, %s205
          %s207 = smul.addr %s200, 16
          %s208 = sadd.s32 %s206, %s207
          %s209 = smul.addr %s208, 8
          %s210 = scalar_lea.vmem %s1, %s209
          %s211 = smul.u32 16, %s22
        $region32: #{tpu_custom_call.1} parent=23 // pred_fallthru
          _
      $region24: #{tpu_custom_call.1} parent=5 // pred_fallthru
        _
      %p212 = scmp.le.s32.totalorder 1, %s13
      %p213 = scmp.lt.s32.totalorder %s13, 4
      %p214 = pnand %p212, %p213
      %p215 = pneg %p214
      // Predicated region
      $region33: #{tpu_custom_call.1} parent=5 // pred_check
        _
      $region34: #{tpu_custom_call.1} parent=5 // pred_check_branch
        %217 = sbr.rel (%p214) target = $region36
      $region35: #{tpu_custom_call.1} parent=5 // pred_region
        %s218 = ssub.s32 %s13, 1
        %p219 = scmp.lt.s32.totalorder %s23, 2
        %s220 = scalar_select %p219, %s23, 2
        %p221 = scmp.lt.s32.totalorder %s24, 0
        %s222 = scalar_select %p221, %s24, 0
        %s223 = sadd.s32 %s222, %s220
        %s224 = smul.addr %s223, 8
        %s225 = scalar_lea.vmem %s0, %s224
        %p226 = pneg %p60
        %p227 = pneg %p57
        %s228 = smul.u32 16, %s25
        %p229 = scmp.lt.s32.totalorder %s23, 2
        %s230 = scalar_select %p229, %s23, 2
        %p231 = scmp.lt.s32.totalorder %s24, 0
        %s232 = scalar_select %p231, %s24, 0
        %p233 = scmp.lt.s32.totalorder %s228, 15
        %s234 = scalar_select %p233, %s228, 15
        %s235 = smul.addr %s232, 16
        %s236 = sadd.s32 %s234, %s235
        %s237 = smul.addr %s230, 16
        %s238 = sadd.s32 %s236, %s237
        %s239 = smul.addr %s238, 8
        %s240 = scalar_lea.vmem %s1, %s239
        %p241 = pneg %p90
        %p242 = pneg %p87
        %p243 = pneg %p111
        %p244 = pneg %p108
        %p245 = pneg %p132
        %p246 = pneg %p129
        %p247 = pneg %p160
        %p248 = pneg %p157
        %s249 = sand.u32 %s147, 1
        %s250 = scalar_lea.sflag [#allocation3], %s249
        %s251 = sand.u32 %s147, 1
        %s252 = smul.addr %s251, 8
        %s253 = scalar_lea.vmem [#allocation2], %s252
        %p254 = scmp.lt.s32.totalorder %s23, 2
        %s255 = scalar_select %p254, %s23, 2
        %p256 = scmp.lt.s32.totalorder %s24, 0
        %s257 = scalar_select %p256, %s24, 0
        %s258 = sadd.s32 %s257, %s255
        %s259 = smul.addr %s258, 8
        %s260 = scalar_lea.vmem %s0, %s259
        %s261 = smul.u32 16, %s25
        %p262 = scmp.lt.s32.totalorder %s23, 2
        %s263 = scalar_select %p262, %s23, 2
        %p264 = scmp.lt.s32.totalorder %s24, 0
        %s265 = scalar_select %p264, %s24, 0
        %p266 = scmp.lt.s32.totalorder %s261, 15
        %s267 = scalar_select %p266, %s261, 15
        %s268 = smul.addr %s265, 16
        %s269 = sadd.s32 %s267, %s268
        %s270 = smul.addr %s263, 16
        %s271 = sadd.s32 %s269, %s270
        %s272 = smul.addr %s271, 8
        %s273 = scalar_lea.vmem %s1, %s272
        %s274 = smul.u32 16, %s25
        %p276 = scmp.eq.s32.totalorder %s25, 0
        // Predicated region
        $region37: #{tpu_custom_call.1} parent=35 // pred_check
          %p277 = pneg %p276
        $region38: #{tpu_custom_call.1} parent=35 // pred_check_branch
          %279 = sbr.rel (%p277) target = $region40
        $region39: #{tpu_custom_call.1} parent=35 // pred_region
          %vm280 = vcmask 80896
          %281 = vst.msk [vmem:[%s253] sm:$0xff] %vm280, inf
        $region40: #{tpu_custom_call.1} parent=35 // pred_fallthru
          _
        %v282 = vld [vmem:[%s260] sm:$0xff]
        %v283 = vld [vmem:[%s273] sm:$0xff]
        %v284 = vld [vmem:[%s273 + $0x8] sm:$0xff]
        %v285 = vld [vmem:[%s273 + $0x10] sm:$0xff]
        %v286 = vld [vmem:[%s273 + $0x18] sm:$0xff]
        %v287 = vld [vmem:[%s273 + $0x20] sm:$0xff]
        %v288 = vld [vmem:[%s273 + $0x28] sm:$0xff]
        %v289 = vld [vmem:[%s273 + $0x30] sm:$0xff]
        %v290 = vld [vmem:[%s273 + $0x38] sm:$0xff]
        %v291 = vld [vmem:[%s273 + $0x40] sm:$0xff]
        %v292 = vld [vmem:[%s273 + $0x48] sm:$0xff]
        %v293 = vld [vmem:[%s273 + $0x50] sm:$0xff]
        %v294 = vld [vmem:[%s273 + $0x58] sm:$0xff]
        %v295 = vld [vmem:[%s273 + $0x60] sm:$0xff]
        %v296 = vld [vmem:[%s273 + $0x68] sm:$0xff]
        %v297 = vld [vmem:[%s273 + $0x70] sm:$0xff]
        %v298 = vld [vmem:[%s273 + $0x78] sm:$0xff]
        %v299 = vld [vmem:[%s2] sm:$0xf]
        %v300 = vld [vmem:[%s2 + $0x4] sm:$0xf]
        %v301 = vld [vmem:[%s2 + $0x8] sm:$0xf]
        %v302 = vld [vmem:[%s2 + $0xc] sm:$0xf]
        %v303 = vld [vmem:[%s2 + $0x10] sm:$0xf]
        %v304 = vld [vmem:[%s2 + $0x14] sm:$0xf]
        %v305 = vld [vmem:[%s2 + $0x18] sm:$0xf]
        %v306 = vld [vmem:[%s2 + $0x1c] sm:$0xf]
        %v307 = vld [vmem:[%s2 + $0x20] sm:$0xf]
        %v308 = vld [vmem:[%s2 + $0x24] sm:$0xf]
        %v309 = vld [vmem:[%s2 + $0x28] sm:$0xf]
        %v310 = vld [vmem:[%s2 + $0x2c] sm:$0xf]
        %v311 = vld [vmem:[%s2 + $0x30] sm:$0xf]
        %v312 = vld [vmem:[%s2 + $0x34] sm:$0xf]
        %v313 = vld [vmem:[%s2 + $0x38] sm:$0xf]
        %v314 = vld [vmem:[%s2 + $0x3c] sm:$0xf]
        %v315 = vld [vmem:[%s3] sm:$0x1]
        %v316 = vlaneseq
        %v317 = vshrl.u32 %v316, 7
        %v318 = vsub.s32 0, %v317
        %v319 = vrot.slane %v282, %v318
        %321 = vset.pattern.permute.xlu0 0
        %322 = vperm.xlu0 %321, %v283
        %v323 = vpop.permute.xlu0 %322
        %326 = vset.pattern.permute.xlu0 0
        %327 = vperm.xlu0 %326, %v284
        %v328 = vpop.permute.xlu0 %327
        %331 = vset.pattern.permute.xlu0 0
        %332 = vperm.xlu0 %331, %v285
        %v333 = vpop.permute.xlu0 %332
        %336 = vset.pattern.permute.xlu0 0
        %337 = vperm.xlu0 %336, %v286
        %v338 = vpop.permute.xlu0 %337
        %341 = vset.pattern.permute.xlu0 0
        %342 = vperm.xlu0 %341, %v287
        %v343 = vpop.permute.xlu0 %342
        %346 = vset.pattern.permute.xlu0 0
        %347 = vperm.xlu0 %346, %v288
        %v348 = vpop.permute.xlu0 %347
        %351 = vset.pattern.permute.xlu0 0
        %352 = vperm.xlu0 %351, %v289
        %v353 = vpop.permute.xlu0 %352
        %356 = vset.pattern.permute.xlu0 0
        %357 = vperm.xlu0 %356, %v290
        %v358 = vpop.permute.xlu0 %357
        %361 = vset.pattern.permute.xlu0 0
        %362 = vperm.xlu0 %361, %v291
        %v363 = vpop.permute.xlu0 %362
        %366 = vset.pattern.permute.xlu0 0
        %367 = vperm.xlu0 %366, %v292
        %v368 = vpop.permute.xlu0 %367
        %371 = vset.pattern.permute.xlu0 0
        %372 = vperm.xlu0 %371, %v293
        %v373 = vpop.permute.xlu0 %372
        %376 = vset.pattern.permute.xlu0 0
        %377 = vperm.xlu0 %376, %v294
        %v378 = vpop.permute.xlu0 %377
        %381 = vset.pattern.permute.xlu0 0
        %382 = vperm.xlu0 %381, %v295
        %v383 = vpop.permute.xlu0 %382
        %386 = vset.pattern.permute.xlu0 0
        %387 = vperm.xlu0 %386, %v296
        %v388 = vpop.permute.xlu0 %387
        %391 = vset.pattern.permute.xlu0 0
        %392 = vperm.xlu0 %391, %v297
        %v393 = vpop.permute.xlu0 %392
        %396 = vset.pattern.permute.xlu0 0
        %397 = vperm.xlu0 %396, %v298
        %v398 = vpop.permute.xlu0 %397
        %vm400 = vcmp.le.f32.partialorder %v319, %v323
        %vm401 = vcmp.le.f32.partialorder %v319, %v328
        %vm402 = vcmp.le.f32.partialorder %v319, %v333
        %vm403 = vcmp.le.f32.partialorder %v319, %v338
        %vm404 = vcmp.le.f32.partialorder %v319, %v343
        %vm405 = vcmp.le.f32.partialorder %v319, %v348
        %vm406 = vcmp.le.f32.partialorder %v319, %v353
        %vm407 = vcmp.le.f32.partialorder %v319, %v358
        %vm408 = vcmp.le.f32.partialorder %v319, %v363
        %vm409 = vcmp.le.f32.partialorder %v319, %v368
        %vm410 = vcmp.le.f32.partialorder %v319, %v373
        %vm411 = vcmp.le.f32.partialorder %v319, %v378
        %vm412 = vcmp.le.f32.partialorder %v319, %v383
        %vm413 = vcmp.le.f32.partialorder %v319, %v388
        %vm414 = vcmp.le.f32.partialorder %v319, %v393
        %vm415 = vcmp.le.f32.partialorder %v319, %v398
        %v416 = vsel %vm400, 1, 0
        %v417 = vsel %vm401, 1, 0
        %v418 = vsel %vm402, 1, 0
        %v419 = vsel %vm403, 1, 0
        %v420 = vsel %vm404, 1, 0
        %v421 = vsel %vm405, 1, 0
        %v422 = vsel %vm406, 1, 0
        %v423 = vsel %vm407, 1, 0
        %v424 = vsel %vm408, 1, 0
        %v425 = vsel %vm409, 1, 0
        %v426 = vsel %vm410, 1, 0
        %v427 = vsel %vm411, 1, 0
        %v428 = vsel %vm412, 1, 0
        %v429 = vsel %vm413, 1, 0
        %v430 = vsel %vm414, 1, 0
        %v431 = vsel %vm415, 1, 0
        %v432 = vcvt.s32.f32 %v416
        %v433 = vcvt.s32.f32 %v417
        %v434 = vcvt.s32.f32 %v418
        %v435 = vcvt.s32.f32 %v419
        %v436 = vcvt.s32.f32 %v420
        %v437 = vcvt.s32.f32 %v421
        %v438 = vcvt.s32.f32 %v422
        %v439 = vcvt.s32.f32 %v423
        %v440 = vcvt.s32.f32 %v424
        %v441 = vcvt.s32.f32 %v425
        %v442 = vcvt.s32.f32 %v426
        %v443 = vcvt.s32.f32 %v427
        %v444 = vcvt.s32.f32 %v428
        %v445 = vcvt.s32.f32 %v429
        %v446 = vcvt.s32.f32 %v430
        %v447 = vcvt.s32.f32 %v431
        %v448 = vpack.c.bf16 %v433, %v432
        %v449 = vpack.c.bf16 %v435, %v434
        %v450 = vpack.c.bf16 %v437, %v436
        %v451 = vpack.c.bf16 %v439, %v438
        %v452 = vpack.c.bf16 %v441, %v440
        %v453 = vpack.c.bf16 %v443, %v442
        %v454 = vpack.c.bf16 %v445, %v444
        %v455 = vpack.c.bf16 %v447, %v446
        %v472 = vunpack.c.l.b16 %v299
        %v473 = vunpack.c.l.b16 %v300
        %v474 = vunpack.c.l.b16 %v301
        %v475 = vunpack.c.l.b16 %v302
        %v476 = vunpack.c.l.b16 %v303
        %v477 = vunpack.c.l.b16 %v304
        %v478 = vunpack.c.l.b16 %v305
        %v479 = vunpack.c.l.b16 %v306
        %v480 = vunpack.c.l.b16 %v307
        %v481 = vunpack.c.l.b16 %v308
        %v482 = vunpack.c.l.b16 %v309
        %v483 = vunpack.c.l.b16 %v310
        %v484 = vunpack.c.l.b16 %v311
        %v485 = vunpack.c.l.b16 %v312
        %v486 = vunpack.c.l.b16 %v313
        %v487 = vunpack.c.l.b16 %v314
        %v488 = vpack.c.b16 %v473, %v472
        %v489 = vpack.c.b16 %v475, %v474
        %v490 = vpack.c.b16 %v477, %v476
        %v491 = vpack.c.b16 %v479, %v478
        %v492 = vpack.c.b16 %v481, %v480
        %v493 = vpack.c.b16 %v483, %v482
        %v494 = vpack.c.b16 %v485, %v484
        %v495 = vpack.c.b16 %v487, %v486
        %504 = vmatprep.subr.bf16.mxu0 0
        %505 = vmatpush1.bf16.msra.mxu0 %v488
        %506 = vmatprep.subr.bf16.mxu0 0
        %507 = vmatpush1.bf16.msra.mxu0 %v489
        %508 = vmatprep.subr.bf16.mxu0 0
        %509 = vmatpush1.bf16.msra.mxu0 %v490
        %510 = vmatprep.subr.bf16.mxu0 0
        %511 = vmatpush1.bf16.msra.mxu0 %v491
        %512 = vmatprep.subr.bf16.mxu0 0
        %513 = vmatpush1.bf16.msra.mxu0 %v492
        %514 = vmatprep.subr.bf16.mxu0 0
        %515 = vmatpush1.bf16.msra.mxu0 %v493
        %516 = vmatprep.subr.bf16.mxu0 0
        %517 = vmatpush1.bf16.msra.mxu0 %v494
        %518 = vmatprep.subr.bf16.mxu0 0
        %519 = vmatpush1.bf16.msra.mxu0 %v495
        %520 = vmatprep.subr.bf16.mxu0 0
        %521 = vmatpush1.bf16.msra.mxu0 0
        %522 = vmatprep.subr.bf16.mxu0 0
        %523 = vmatpush1.bf16.msra.mxu0 0
        %524 = vmatprep.subr.bf16.mxu0 0
        %525 = vmatpush1.bf16.msra.mxu0 0
        %526 = vmatprep.subr.bf16.mxu0 0
        %527 = vmatpush1.bf16.msra.mxu0 0
        %528 = vmatprep.subr.bf16.mxu0 0
        %529 = vmatpush1.bf16.msra.mxu0 0
        %530 = vmatprep.subr.bf16.mxu0 0
        %531 = vmatpush1.bf16.msra.mxu0 0
        %532 = vmatprep.subr.bf16.mxu0 0
        %533 = vmatpush1.bf16.msra.mxu0 0
        %534 = vmatprep.subr.bf16.mxu0 0
        %535 = vmatpush1.bf16.msra.mxu0 0
        %536 = vmatprep.mubr.bf16.mxu0 0
        %537 = vmatmul.mubr.bf16.gmra.mrb[0].mxu0 %v448
        %v538 = vpop.f32.mrb[0].mxu0
        %v539 = vadd.f32 0.0, %v538
        %v540 = vpop.f32.mrb[0].mxu0
        %v541 = vpop.f32.mrb[0].mxu0
        %v542 = vadd.f32 0.0, %v541
        %v543 = vpop.f32.mrb[0].mxu0
        %544 = vmatprep.mubr.bf16.mxu0 0
        %545 = vmatmul.mubr.bf16.gmra.mrb[0].mxu0 %v449
        %v546 = vpop.f32.mrb[0].mxu0
        %v547 = vadd.f32 0.0, %v546
        %v548 = vpop.f32.mrb[0].mxu0
        %v549 = vpop.f32.mrb[0].mxu0
        %v550 = vadd.f32 0.0, %v549
        %v551 = vpop.f32.mrb[0].mxu0
        %552 = vmatprep.mubr.bf16.mxu0 0
        %553 = vmatmul.mubr.bf16.gmra.mrb[0].mxu0 %v450
        %v554 = vpop.f32.mrb[0].mxu0
        %v555 = vadd.f32 0.0, %v554
        %v556 = vpop.f32.mrb[0].mxu0
        %v557 = vpop.f32.mrb[0].mxu0
        %v558 = vadd.f32 0.0, %v557
        %v559 = vpop.f32.mrb[0].mxu0
        %560 = vmatprep.mubr.bf16.mxu0 0
        %561 = vmatmul.mubr.bf16.gmra.mrb[0].mxu0 %v451
        %v562 = vpop.f32.mrb[0].mxu0
        %v563 = vadd.f32 0.0, %v562
        %v564 = vpop.f32.mrb[0].mxu0
        %v565 = vpop.f32.mrb[0].mxu0
        %v566 = vadd.f32 0.0, %v565
        %v567 = vpop.f32.mrb[0].mxu0
        %568 = vmatprep.mubr.bf16.mxu0 0
        %569 = vmatmul.mubr.bf16.gmra.mrb[0].mxu0 %v452
        %v570 = vpop.f32.mrb[0].mxu0
        %v571 = vadd.f32 0.0, %v570
        %v572 = vpop.f32.mrb[0].mxu0
        %v573 = vpop.f32.mrb[0].mxu0
        %v574 = vadd.f32 0.0, %v573
        %v575 = vpop.f32.mrb[0].mxu0
        %576 = vmatprep.mubr.bf16.mxu0 0
        %577 = vmatmul.mubr.bf16.gmra.mrb[0].mxu0 %v453
        %v578 = vpop.f32.mrb[0].mxu0
        %v579 = vadd.f32 0.0, %v578
        %v580 = vpop.f32.mrb[0].mxu0
        %v581 = vpop.f32.mrb[0].mxu0
        %v582 = vadd.f32 0.0, %v581
        %v583 = vpop.f32.mrb[0].mxu0
        %584 = vmatprep.mubr.bf16.mxu0 0
        %585 = vmatmul.mubr.bf16.gmra.mrb[0].mxu0 %v454
        %v586 = vpop.f32.mrb[0].mxu0
        %v587 = vadd.f32 0.0, %v586
        %v588 = vpop.f32.mrb[0].mxu0
        %v589 = vpop.f32.mrb[0].mxu0
        %v590 = vadd.f32 0.0, %v589
        %v591 = vpop.f32.mrb[0].mxu0
        %592 = vmatprep.mubr.bf16.mxu0 0
        %593 = vmatmul.mubr.bf16.gmra.mrb[0].mxu0 %v455
        %v594 = vpop.f32.mrb[0].mxu0
        %v595 = vadd.f32 0.0, %v594
        %v596 = vpop.f32.mrb[0].mxu0
        %v597 = vpop.f32.mrb[0].mxu0
        %v598 = vadd.f32 0.0, %v597
        %v599 = vpop.f32.mrb[0].mxu0
        %600 = vdwg.mxu0
        %v602 = vlaneseq
        %v603 = vshrl.u32 %v602, 7
        %v604 = vsub.s32 0, %v603
        %v605 = vrot.slane %v315, %v604
        %vm607 = vcmp.ge.f32.partialorder %v539, %v605
        %vm608 = vcmp.ge.f32.partialorder %v542, %v605
        %vm609 = vcmp.ge.f32.partialorder %v547, %v605
        %vm610 = vcmp.ge.f32.partialorder %v550, %v605
        %vm611 = vcmp.ge.f32.partialorder %v555, %v605
        %vm612 = vcmp.ge.f32.partialorder %v558, %v605
        %vm613 = vcmp.ge.f32.partialorder %v563, %v605
        %vm614 = vcmp.ge.f32.partialorder %v566, %v605
        %vm615 = vcmp.ge.f32.partialorder %v571, %v605
        %vm616 = vcmp.ge.f32.partialorder %v574, %v605
        %vm617 = vcmp.ge.f32.partialorder %v579, %v605
        %vm618 = vcmp.ge.f32.partialorder %v582, %v605
        %vm619 = vcmp.ge.f32.partialorder %v587, %v605
        %vm620 = vcmp.ge.f32.partialorder %v590, %v605
        %vm621 = vcmp.ge.f32.partialorder %v595, %v605
        %vm622 = vcmp.ge.f32.partialorder %v598, %v605
        %v623 = vsel %vm607, %v323, inf
        %v624 = vsel %vm608, %v328, inf
        %v625 = vsel %vm609, %v333, inf
        %v626 = vsel %vm610, %v338, inf
        %v627 = vsel %vm611, %v343, inf
        %v628 = vsel %vm612, %v348, inf
        %v629 = vsel %vm613, %v353, inf
        %v630 = vsel %vm614, %v358, inf
        %v631 = vsel %vm615, %v363, inf
        %v632 = vsel %vm616, %v368, inf
        %v633 = vsel %vm617, %v373, inf
        %v634 = vsel %vm618, %v378, inf
        %v635 = vsel %vm619, %v383, inf
        %v636 = vsel %vm620, %v388, inf
        %v637 = vsel %vm621, %v393, inf
        %v638 = vsel %vm622, %v398, inf
        %vm639 = vcmask 80896
        %v640 = vsel %vm639, %v623, inf
        %v641 = vsel %vm639, %v624, inf
        %v642 = vsel %vm639, %v625, inf
        %v643 = vsel %vm639, %v626, inf
        %v644 = vsel %vm639, %v627, inf
        %v645 = vmin.f32 %v640, %v644
        %v646 = vsel %vm639, %v628, inf
        %v647 = vmin.f32 %v641, %v646
        %v648 = vsel %vm639, %v629, inf
        %v649 = vmin.f32 %v642, %v648
        %v650 = vsel %vm639, %v630, inf
        %v651 = vmin.f32 %v643, %v650
        %v652 = vsel %vm639, %v631, inf
        %v653 = vmin.f32 %v645, %v652
        %v654 = vsel %vm639, %v632, inf
        %v655 = vmin.f32 %v647, %v654
        %v656 = vsel %vm639, %v633, inf
        %v657 = vmin.f32 %v649, %v656
        %v658 = vsel %vm639, %v634, inf
        %v659 = vmin.f32 %v651, %v658
        %v660 = vsel %vm639, %v635, inf
        %v661 = vmin.f32 %v653, %v660
        %v662 = vsel %vm639, %v636, inf
        %v663 = vmin.f32 %v655, %v662
        %v664 = vsel %vm639, %v637, inf
        %v665 = vmin.f32 %v657, %v664
        %v666 = vsel %vm639, %v638, inf
        %v667 = vmin.f32 %v659, %v666
        %v668 = vmin.f32 %v661, %v663
        %v669 = vmin.f32 %v665, %v667
        %v670 = vmin.f32 %v668, %v669
        %v671 = vrot.slane %v670, 4
        %v672 = vmin.f32 %v670, %v671
        %v673 = vrot.slane %v672, 2
        %v674 = vmin.f32 %v672, %v673
        %v675 = vrot.slane %v674, 1
        %v676 = vmin.f32 %v674, %v675
        %v677 = vlaneseq
        %v678 = vshrl.u32 %v677, 7
        %v679 = vsub.s32 1, %v678
        %v680 = vrot.slane %v282, %v679
        %681 = vset.pattern.permute.xlu0 1
        %682 = vperm.xlu0 %681, %v283
        %v683 = vpop.permute.xlu0 %682
        %685 = vset.pattern.permute.xlu0 1
        %686 = vperm.xlu0 %685, %v284
        %v687 = vpop.permute.xlu0 %686
        %689 = vset.pattern.permute.xlu0 1
        %690 = vperm.xlu0 %689, %v285
        %v691 = vpop.permute.xlu0 %690
        %693 = vset.pattern.permute.xlu0 1
        %694 = vperm.xlu0 %693, %v286
        %v695 = vpop.permute.xlu0 %694
        %697 = vset.pattern.permute.xlu0 1
        %698 = vperm.xlu0 %697, %v287
        %v699 = vpop.permute.xlu0 %698
        %701 = vset.pattern.permute.xlu0 1
        %702 = vperm.xlu0 %701, %v288
        %v703 = vpop.permute.xlu0 %702
        %705 = vset.pattern.permute.xlu0 1
        %706 = vperm.xlu0 %705, %v289
        %v707 = vpop.permute.xlu0 %706
        %709 = vset.pattern.permute.xlu0 1
        %710 = vperm.xlu0 %709, %v290
        %v711 = vpop.permute.xlu0 %710
        %713 = vset.pattern.permute.xlu0 1
        %714 = vperm.xlu0 %713, %v291
        %v715 = vpop.permute.xlu0 %714
        %717 = vset.pattern.permute.xlu0 1
        %718 = vperm.xlu0 %717, %v292
        %v719 = vpop.permute.xlu0 %718
        %721 = vset.pattern.permute.xlu0 1
        %722 = vperm.xlu0 %721, %v293
        %v723 = vpop.permute.xlu0 %722
        %725 = vset.pattern.permute.xlu0 1
        %726 = vperm.xlu0 %725, %v294
        %v727 = vpop.permute.xlu0 %726
        %729 = vset.pattern.permute.xlu0 1
        %730 = vperm.xlu0 %729, %v295
        %v731 = vpop.permute.xlu0 %730
        %733 = vset.pattern.permute.xlu0 1
        %734 = vperm.xlu0 %733, %v296
        %v735 = vpop.permute.xlu0 %734
        %737 = vset.pattern.permute.xlu0 1
        %738 = vperm.xlu0 %737, %v297
        %v739 = vpop.permute.xlu0 %738
        %741 = vset.pattern.permute.xlu0 1
        %742 = vperm.xlu0 %741, %v298
        %v743 = vpop.permute.xlu0 %742
        %vm745 = vcmp.le.f32.partialorder %v680, %v683
        %vm746 = vcmp.le.f32.partialorder %v680, %v687
        %vm747 = vcmp.le.f32.partialorder %v680, %v691
        %vm748 = vcmp.le.f32.partialorder %v680, %v695
        %vm749 = vcmp.le.f32.partialorder %v680, %v699
        %vm750 = vcmp.le.f32.partialorder %v680, %v703
        %vm751 = vcmp.le.f32.partialorder %v680, %v707
        %vm752 = vcmp.le.f32.partialorder %v680, %v711
        %vm753 = vcmp.le.f32.partialorder %v680, %v715
        %vm754 = vcmp.le.f32.partialorder %v680, %v719
        %vm755 = vcmp.le.f32.partialorder %v680, %v723
        %vm756 = vcmp.le.f32.partialorder %v680, %v727
        %vm757 = vcmp.le.f32.partialorder %v680, %v731
        %vm758 = vcmp.le.f32.partialorder %v680, %v735
        %vm759 = vcmp.le.f32.partialorder %v680, %v739
        %vm760 = vcmp.le.f32.partialorder %v680, %v743
        %v761 = vsel %vm745, 1, 0
        %v762 = vsel %vm746, 1, 0
        %v763 = vsel %vm747, 1, 0
        %v764 = vsel %vm748, 1, 0
        %v765 = vsel %vm749, 1, 0
        %v766 = vsel %vm750, 1, 0
        %v767 = vsel %vm751, 1, 0
        %v768 = vsel %vm752, 1, 0
        %v769 = vsel %vm753, 1, 0
        %v770 = vsel %vm754, 1, 0
        %v771 = vsel %vm755, 1, 0
        %v772 = vsel %vm756, 1, 0
        %v773 = vsel %vm757, 1, 0
        %v774 = vsel %vm758, 1, 0
        %v775 = vsel %vm759, 1, 0
        %v776 = vsel %vm760, 1, 0
        %v777 = vcvt.s32.f32 %v761
        %v778 = vcvt.s32.f32 %v762
        %v779 = vcvt.s32.f32 %v763
        %v780 = vcvt.s32.f32 %v764
        %v781 = vcvt.s32.f32 %v765
        %v782 = vcvt.s32.f32 %v766
        %v783 = vcvt.s32.f32 %v767
        %v784 = vcvt.s32.f32 %v768
        %v785 = vcvt.s32.f32 %v769
        %v786 = vcvt.s32.f32 %v770
        %v787 = vcvt.s32.f32 %v771
        %v788 = vcvt.s32.f32 %v772
        %v789 = vcvt.s32.f32 %v773
        %v790 = vcvt.s32.f32 %v774
        %v791 = vcvt.s32.f32 %v775
        %v792 = vcvt.s32.f32 %v776
        %v793 = vpack.c.bf16 %v778, %v777
        %v794 = vpack.c.bf16 %v780, %v779
        %v795 = vpack.c.bf16 %v782, %v781
        %v796 = vpack.c.bf16 %v784, %v783
        %v797 = vpack.c.bf16 %v786, %v785
        %v798 = vpack.c.bf16 %v788, %v787
        %v799 = vpack.c.bf16 %v790, %v789
        %v800 = vpack.c.bf16 %v792, %v791
        %801 = vmatprep.subr.bf16.mxu0 0
        %802 = vmatpush1.bf16.msra.mxu0 %v488
        %803 = vmatprep.subr.bf16.mxu0 0
        %804 = vmatpush1.bf16.msra.mxu0 %v489
        %805 = vmatprep.subr.bf16.mxu0 0
        %806 = vmatpush1.bf16.msra.mxu0 %v490
        %807 = vmatprep.subr.bf16.mxu0 0
        %808 = vmatpush1.bf16.msra.mxu0 %v491
        %809 = vmatprep.subr.bf16.mxu0 0
        %810 = vmatpush1.bf16.msra.mxu0 %v492
        %811 = vmatprep.subr.bf16.mxu0 0
        %812 = vmatpush1.bf16.msra.mxu0 %v493
        %813 = vmatprep.subr.bf16.mxu0 0
        %814 = vmatpush1.bf16.msra.mxu0 %v494
        %815 = vmatprep.subr.bf16.mxu0 0
        %816 = vmatpush1.bf16.msra.mxu0 %v495
        %817 = vmatprep.subr.bf16.mxu0 0
        %818 = vmatpush1.bf16.msra.mxu0 0
        %819 = vmatprep.subr.bf16.mxu0 0
        %820 = vmatpush1.bf16.msra.mxu0 0
        %821 = vmatprep.subr.bf16.mxu0 0
        %822 = vmatpush1.bf16.msra.mxu0 0
        %823 = vmatprep.subr.bf16.mxu0 0
        %824 = vmatpush1.bf16.msra.mxu0 0
        %825 = vmatprep.subr.bf16.mxu0 0
        %826 = vmatpush1.bf16.msra.mxu0 0
        %827 = vmatprep.subr.bf16.mxu0 0
        %828 = vmatpush1.bf16.msra.mxu0 0
        %829 = vmatprep.subr.bf16.mxu0 0
        %830 = vmatpush1.bf16.msra.mxu0 0
        %831 = vmatprep.subr.bf16.mxu0 0
        %832 = vmatpush1.bf16.msra.mxu0 0
        %833 = vmatprep.mubr.bf16.mxu0 0
        %834 = vmatmul.mubr.bf16.gmra.mrb[0].mxu0 %v793
        %v835 = vpop.f32.mrb[0].mxu0
        %v836 = vadd.f32 0.0, %v835
        %v837 = vpop.f32.mrb[0].mxu0
        %v838 = vpop.f32.mrb[0].mxu0
        %v839 = vadd.f32 0.0, %v838
        %v840 = vpop.f32.mrb[0].mxu0
        %841 = vmatprep.mubr.bf16.mxu0 0
        %842 = vmatmul.mubr.bf16.gmra.mrb[0].mxu0 %v794
        %v843 = vpop.f32.mrb[0].mxu0
        %v844 = vadd.f32 0.0, %v843
        %v845 = vpop.f32.mrb[0].mxu0
        %v846 = vpop.f32.mrb[0].mxu0
        %v847 = vadd.f32 0.0, %v846
        %v848 = vpop.f32.mrb[0].mxu0
        %849 = vmatprep.mubr.bf16.mxu0 0
        %850 = vmatmul.mubr.bf16.gmra.mrb[0].mxu0 %v795
        %v851 = vpop.f32.mrb[0].mxu0
        %v852 = vadd.f32 0.0, %v851
        %v853 = vpop.f32.mrb[0].mxu0
        %v854 = vpop.f32.mrb[0].mxu0
        %v855 = vadd.f32 0.0, %v854
        %v856 = vpop.f32.mrb[0].mxu0
        %857 = vmatprep.mubr.bf16.mxu0 0
        %858 = vmatmul.mubr.bf16.gmra.mrb[0].mxu0 %v796
        %v859 = vpop.f32.mrb[0].mxu0
        %v860 = vadd.f32 0.0, %v859
        %v861 = vpop.f32.mrb[0].mxu0
        %v862 = vpop.f32.mrb[0].mxu0
        %v863 = vadd.f32 0.0, %v862
        %v864 = vpop.f32.mrb[0].mxu0
        %865 = vmatprep.mubr.bf16.mxu0 0
        %866 = vmatmul.mubr.bf16.gmra.mrb[0].mxu0 %v797
        %v867 = vpop.f32.mrb[0].mxu0
        %v868 = vadd.f32 0.0, %v867
        %v869 = vpop.f32.mrb[0].mxu0
        %v870 = vpop.f32.mrb[0].mxu0
        %v871 = vadd.f32 0.0, %v870
        %v872 = vpop.f32.mrb[0].mxu0
        %873 = vmatprep.mubr.bf16.mxu0 0
        %874 = vmatmul.mubr.bf16.gmra.mrb[0].mxu0 %v798
        %v875 = vpop.f32.mrb[0].mxu0
        %v876 = vadd.f32 0.0, %v875
        %v877 = vpop.f32.mrb[0].mxu0
        %v878 = vpop.f32.mrb[0].mxu0
        %v879 = vadd.f32 0.0, %v878
        %v880 = vpop.f32.mrb[0].mxu0
        %881 = vmatprep.mubr.bf16.mxu0 0
        %882 = vmatmul.mubr.bf16.gmra.mrb[0].mxu0 %v799
        %v883 = vpop.f32.mrb[0].mxu0
        %v884 = vadd.f32 0.0, %v883
        %v885 = vpop.f32.mrb[0].mxu0
        %v886 = vpop.f32.mrb[0].mxu0
        %v887 = vadd.f32 0.0, %v886
        %v888 = vpop.f32.mrb[0].mxu0
        %889 = vmatprep.mubr.bf16.mxu0 0
        %890 = vmatmul.mubr.bf16.gmra.mrb[0].mxu0 %v800
        %v891 = vpop.f32.mrb[0].mxu0
        %v892 = vadd.f32 0.0, %v891
        %v893 = vpop.f32.mrb[0].mxu0
        %v894 = vpop.f32.mrb[0].mxu0
        %v895 = vadd.f32 0.0, %v894
        %v896 = vpop.f32.mrb[0].mxu0
        %897 = vdwg.mxu0
        %vm898 = vcmp.ge.f32.partialorder %v836, %v605
        %vm899 = vcmp.ge.f32.partialorder %v839, %v605
        %vm900 = vcmp.ge.f32.partialorder %v844, %v605
        %vm901 = vcmp.ge.f32.partialorder %v847, %v605
        %vm902 = vcmp.ge.f32.partialorder %v852, %v605
        %vm903 = vcmp.ge.f32.partialorder %v855, %v605
        %vm904 = vcmp.ge.f32.partialorder %v860, %v605
        %vm905 = vcmp.ge.f32.partialorder %v863, %v605
        %vm906 = vcmp.ge.f32.partialorder %v868, %v605
        %vm907 = vcmp.ge.f32.partialorder %v871, %v605
        %vm908 = vcmp.ge.f32.partialorder %v876, %v605
        %vm909 = vcmp.ge.f32.partialorder %v879, %v605
        %vm910 = vcmp.ge.f32.partialorder %v884, %v605
        %vm911 = vcmp.ge.f32.partialorder %v887, %v605
        %vm912 = vcmp.ge.f32.partialorder %v892, %v605
        %vm913 = vcmp.ge.f32.partialorder %v895, %v605
        %v914 = vsel %vm898, %v683, inf
        %v915 = vsel %vm899, %v687, inf
        %v916 = vsel %vm900, %v691, inf
        %v917 = vsel %vm901, %v695, inf
        %v918 = vsel %vm902, %v699, inf
        %v919 = vsel %vm903, %v703, inf
        %v920 = vsel %vm904, %v707, inf
        %v921 = vsel %vm905, %v711, inf
        %v922 = vsel %vm906, %v715, inf
        %v923 = vsel %vm907, %v719, inf
        %v924 = vsel %vm908, %v723, inf
        %v925 = vsel %vm909, %v727, inf
        %v926 = vsel %vm910, %v731, inf
        %v927 = vsel %vm911, %v735, inf
        %v928 = vsel %vm912, %v739, inf
        %v929 = vsel %vm913, %v743, inf
        %v930 = vsel %vm639, %v914, inf
        %v931 = vsel %vm639, %v915, inf
        %v932 = vsel %vm639, %v916, inf
        %v933 = vsel %vm639, %v917, inf
        %v934 = vsel %vm639, %v918, inf
        %v935 = vmin.f32 %v930, %v934
        %v936 = vsel %vm639, %v919, inf
        %v937 = vmin.f32 %v931, %v936
        %v938 = vsel %vm639, %v920, inf
        %v939 = vmin.f32 %v932, %v938
        %v940 = vsel %vm639, %v921, inf
        %v941 = vmin.f32 %v933, %v940
        %v942 = vsel %vm639, %v922, inf
        %v943 = vmin.f32 %v935, %v942
        %v944 = vsel %vm639, %v923, inf
        %v945 = vmin.f32 %v937, %v944
        %v946 = vsel %vm639, %v924, inf
        %v947 = vmin.f32 %v939, %v946
        %v948 = vsel %vm639, %v925, inf
        %v949 = vmin.f32 %v941, %v948
        %v950 = vsel %vm639, %v926, inf
        %v951 = vmin.f32 %v943, %v950
        %v952 = vsel %vm639, %v927, inf
        %v953 = vmin.f32 %v945, %v952
        %v954 = vsel %vm639, %v928, inf
        %v955 = vmin.f32 %v947, %v954
        %v956 = vsel %vm639, %v929, inf
        %v957 = vmin.f32 %v949, %v956
        %v958 = vmin.f32 %v951, %v953
        %v959 = vmin.f32 %v955, %v957
        %v960 = vmin.f32 %v958, %v959
        %v961 = vrot.slane %v960, 4
        %v962 = vmin.f32 %v960, %v961
        %v963 = vrot.slane %v962, 2
        %v964 = vmin.f32 %v962, %v963
        %v965 = vrot.slane %v964, 1
        %v966 = vmin.f32 %v964, %v965
        %v967 = vlaneseq
        %v968 = vshrl.u32 %v967, 7
        %v969 = vsub.s32 2, %v968
        %v970 = vrot.slane %v282, %v969
        %971 = vset.pattern.permute.xlu0 2
        %972 = vperm.xlu0 %971, %v283
        %v973 = vpop.permute.xlu0 %972
        %975 = vset.pattern.permute.xlu0 2
        %976 = vperm.xlu0 %975, %v284
        %v977 = vpop.permute.xlu0 %976
        %979 = vset.pattern.permute.xlu0 2
        %980 = vperm.xlu0 %979, %v285
        %v981 = vpop.permute.xlu0 %980
        %983 = vset.pattern.permute.xlu0 2
        %984 = vperm.xlu0 %983, %v286
        %v985 = vpop.permute.xlu0 %984
        %987 = vset.pattern.permute.xlu0 2
        %988 = vperm.xlu0 %987, %v287
        %v989 = vpop.permute.xlu0 %988
        %991 = vset.pattern.permute.xlu0 2
        %992 = vperm.xlu0 %991, %v288
        %v993 = vpop.permute.xlu0 %992
        %995 = vset.pattern.permute.xlu0 2
        %996 = vperm.xlu0 %995, %v289
        %v997 = vpop.permute.xlu0 %996
        %999 = vset.pattern.permute.xlu0 2
        %1000 = vperm.xlu0 %999, %v290
        %v1001 = vpop.permute.xlu0 %1000
        %1003 = vset.pattern.permute.xlu0 2
        %1004 = vperm.xlu0 %1003, %v291
        %v1005 = vpop.permute.xlu0 %1004
        %1007 = vset.pattern.permute.xlu0 2
        %1008 = vperm.xlu0 %1007, %v292
        %v1009 = vpop.permute.xlu0 %1008
        %1011 = vset.pattern.permute.xlu0 2
        %1012 = vperm.xlu0 %1011, %v293
        %v1013 = vpop.permute.xlu0 %1012
        %1015 = vset.pattern.permute.xlu0 2
        %1016 = vperm.xlu0 %1015, %v294
        %v1017 = vpop.permute.xlu0 %1016
        %1019 = vset.pattern.permute.xlu0 2
        %1020 = vperm.xlu0 %1019, %v295
        %v1021 = vpop.permute.xlu0 %1020
        %1023 = vset.pattern.permute.xlu0 2
        %1024 = vperm.xlu0 %1023, %v296
        %v1025 = vpop.permute.xlu0 %1024
        %1027 = vset.pattern.permute.xlu0 2
        %1028 = vperm.xlu0 %1027, %v297
        %v1029 = vpop.permute.xlu0 %1028
        %1031 = vset.pattern.permute.xlu0 2
        %1032 = vperm.xlu0 %1031, %v298
        %v1033 = vpop.permute.xlu0 %1032
        %vm1035 = vcmp.le.f32.partialorder %v970, %v973
        %vm1036 = vcmp.le.f32.partialorder %v970, %v977
        %vm1037 = vcmp.le.f32.partialorder %v970, %v981
        %vm1038 = vcmp.le.f32.partialorder %v970, %v985
        %vm1039 = vcmp.le.f32.partialorder %v970, %v989
        %vm1040 = vcmp.le.f32.partialorder %v970, %v993
        %vm1041 = vcmp.le.f32.partialorder %v970, %v997
        %vm1042 = vcmp.le.f32.partialorder %v970, %v1001
        %vm1043 = vcmp.le.f32.partialorder %v970, %v1005
        %vm1044 = vcmp.le.f32.partialorder %v970, %v1009
        %vm1045 = vcmp.le.f32.partialorder %v970, %v1013
        %vm1046 = vcmp.le.f32.partialorder %v970, %v1017
        %vm1047 = vcmp.le.f32.partialorder %v970, %v1021
        %vm1048 = vcmp.le.f32.partialorder %v970, %v1025
        %vm1049 = vcmp.le.f32.partialorder %v970, %v1029
        %vm1050 = vcmp.le.f32.partialorder %v970, %v1033
        %v1051 = vsel %vm1035, 1, 0
        %v1052 = vsel %vm1036, 1, 0
        %v1053 = vsel %vm1037, 1, 0
        %v1054 = vsel %vm1038, 1, 0
        %v1055 = vsel %vm1039, 1, 0
        %v1056 = vsel %vm1040, 1, 0
        %v1057 = vsel %vm1041, 1, 0
        %v1058 = vsel %vm1042, 1, 0
        %v1059 = vsel %vm1043, 1, 0
        %v1060 = vsel %vm1044, 1, 0
        %v1061 = vsel %vm1045, 1, 0
        %v1062 = vsel %vm1046, 1, 0
        %v1063 = vsel %vm1047, 1, 0
        %v1064 = vsel %vm1048, 1, 0
        %v1065 = vsel %vm1049, 1, 0
        %v1066 = vsel %vm1050, 1, 0
        %v1067 = vcvt.s32.f32 %v1051
        %v1068 = vcvt.s32.f32 %v1052
        %v1069 = vcvt.s32.f32 %v1053
        %v1070 = vcvt.s32.f32 %v1054
        %v1071 = vcvt.s32.f32 %v1055
        %v1072 = vcvt.s32.f32 %v1056
        %v1073 = vcvt.s32.f32 %v1057
        %v1074 = vcvt.s32.f32 %v1058
        %v1075 = vcvt.s32.f32 %v1059
        %v1076 = vcvt.s32.f32 %v1060
        %v1077 = vcvt.s32.f32 %v1061
        %v1078 = vcvt.s32.f32 %v1062
        %v1079 = vcvt.s32.f32 %v1063
        %v1080 = vcvt.s32.f32 %v1064
        %v1081 = vcvt.s32.f32 %v1065
        %v1082 = vcvt.s32.f32 %v1066
        %v1083 = vpack.c.bf16 %v1068, %v1067
        %v1084 = vpack.c.bf16 %v1070, %v1069
        %v1085 = vpack.c.bf16 %v1072, %v1071
        %v1086 = vpack.c.bf16 %v1074, %v1073
        %v1087 = vpack.c.bf16 %v1076, %v1075
        %v1088 = vpack.c.bf16 %v1078, %v1077
        %v1089 = vpack.c.bf16 %v1080, %v1079
        %v1090 = vpack.c.bf16 %v1082, %v1081
        %1091 = vmatprep.subr.bf16.mxu0 0
        %1092 = vmatpush1.bf16.msra.mxu0 %v488
        %1093 = vmatprep.subr.bf16.mxu0 0
        %1094 = vmatpush1.bf16.msra.mxu0 %v489
        %1095 = vmatprep.subr.bf16.mxu0 0
        %1096 = vmatpush1.bf16.msra.mxu0 %v490
        %1097 = vmatprep.subr.bf16.mxu0 0
        %1098 = vmatpush1.bf16.msra.mxu0 %v491
        %1099 = vmatprep.subr.bf16.mxu0 0
        %1100 = vmatpush1.bf16.msra.mxu0 %v492
        %1101 = vmatprep.subr.bf16.mxu0 0
        %1102 = vmatpush1.bf16.msra.mxu0 %v493
        %1103 = vmatprep.subr.bf16.mxu0 0
        %1104 = vmatpush1.bf16.msra.mxu0 %v494
        %1105 = vmatprep.subr.bf16.mxu0 0
        %1106 = vmatpush1.bf16.msra.mxu0 %v495
        %1107 = vmatprep.subr.bf16.mxu0 0
        %1108 = vmatpush1.bf16.msra.mxu0 0
        %1109 = vmatprep.subr.bf16.mxu0 0
        %1110 = vmatpush1.bf16.msra.mxu0 0
        %1111 = vmatprep.subr.bf16.mxu0 0
        %1112 = vmatpush1.bf16.msra.mxu0 0
        %1113 = vmatprep.subr.bf16.mxu0 0
        %1114 = vmatpush1.bf16.msra.mxu0 0
        %1115 = vmatprep.subr.bf16.mxu0 0
        %1116 = vmatpush1.bf16.msra.mxu0 0
        %1117 = vmatprep.subr.bf16.mxu0 0
        %1118 = vmatpush1.bf16.msra.mxu0 0
        %1119 = vmatprep.subr.bf16.mxu0 0
        %1120 = vmatpush1.bf16.msra.mxu0 0
        %1121 = vmatprep.subr.bf16.mxu0 0
        %1122 = vmatpush1.bf16.msra.mxu0 0
        %1123 = vmatprep.mubr.bf16.mxu0 0
        %1124 = vmatmul.mubr.bf16.gmra.mrb[0].mxu0 %v1083
        %v1125 = vpop.f32.mrb[0].mxu0
        %v1126 = vadd.f32 0.0, %v1125
        %v1127 = vpop.f32.mrb[0].mxu0
        %v1128 = vpop.f32.mrb[0].mxu0
        %v1129 = vadd.f32 0.0, %v1128
        %v1130 = vpop.f32.mrb[0].mxu0
        %1131 = vmatprep.mubr.bf16.mxu0 0
        %1132 = vmatmul.mubr.bf16.gmra.mrb[0].mxu0 %v1084
        %v1133 = vpop.f32.mrb[0].mxu0
        %v1134 = vadd.f32 0.0, %v1133
        %v1135 = vpop.f32.mrb[0].mxu0
        %v1136 = vpop.f32.mrb[0].mxu0
        %v1137 = vadd.f32 0.0, %v1136
        %v1138 = vpop.f32.mrb[0].mxu0
        %1139 = vmatprep.mubr.bf16.mxu0 0
        %1140 = vmatmul.mubr.bf16.gmra.mrb[0].mxu0 %v1085
        %v1141 = vpop.f32.mrb[0].mxu0
        %v1142 = vadd.f32 0.0, %v1141
        %v1143 = vpop.f32.mrb[0].mxu0
        %v1144 = vpop.f32.mrb[0].mxu0
        %v1145 = vadd.f32 0.0, %v1144
        %v1146 = vpop.f32.mrb[0].mxu0
        %1147 = vmatprep.mubr.bf16.mxu0 0
        %1148 = vmatmul.mubr.bf16.gmra.mrb[0].mxu0 %v1086
        %v1149 = vpop.f32.mrb[0].mxu0
        %v1150 = vadd.f32 0.0, %v1149
        %v1151 = vpop.f32.mrb[0].mxu0
        %v1152 = vpop.f32.mrb[0].mxu0
        %v1153 = vadd.f32 0.0, %v1152
        %v1154 = vpop.f32.mrb[0].mxu0
        %1155 = vmatprep.mubr.bf16.mxu0 0
        %1156 = vmatmul.mubr.bf16.gmra.mrb[0].mxu0 %v1087
        %v1157 = vpop.f32.mrb[0].mxu0
        %v1158 = vadd.f32 0.0, %v1157
        %v1159 = vpop.f32.mrb[0].mxu0
        %v1160 = vpop.f32.mrb[0].mxu0
        %v1161 = vadd.f32 0.0, %v1160
        %v1162 = vpop.f32.mrb[0].mxu0
        %1163 = vmatprep.mubr.bf16.mxu0 0
        %1164 = vmatmul.mubr.bf16.gmra.mrb[0].mxu0 %v1088
        %v1165 = vpop.f32.mrb[0].mxu0
        %v1166 = vadd.f32 0.0, %v1165
        %v1167 = vpop.f32.mrb[0].mxu0
        %v1168 = vpop.f32.mrb[0].mxu0
        %v1169 = vadd.f32 0.0, %v1168
        %v1170 = vpop.f32.mrb[0].mxu0
        %1171 = vmatprep.mubr.bf16.mxu0 0
        %1172 = vmatmul.mubr.bf16.gmra.mrb[0].mxu0 %v1089
        %v1173 = vpop.f32.mrb[0].mxu0
        %v1174 = vadd.f32 0.0, %v1173
        %v1175 = vpop.f32.mrb[0].mxu0
        %v1176 = vpop.f32.mrb[0].mxu0
        %v1177 = vadd.f32 0.0, %v1176
        %v1178 = vpop.f32.mrb[0].mxu0
        %1179 = vmatprep.mubr.bf16.mxu0 0
        %1180 = vmatmul.mubr.bf16.gmra.mrb[0].mxu0 %v1090
        %v1181 = vpop.f32.mrb[0].mxu0
        %v1182 = vadd.f32 0.0, %v1181
        %v1183 = vpop.f32.mrb[0].mxu0
        %v1184 = vpop.f32.mrb[0].mxu0
        %v1185 = vadd.f32 0.0, %v1184
        %v1186 = vpop.f32.mrb[0].mxu0
        %1187 = vdwg.mxu0
        %vm1188 = vcmp.ge.f32.partialorder %v1126, %v605
        %vm1189 = vcmp.ge.f32.partialorder %v1129, %v605
        %vm1190 = vcmp.ge.f32.partialorder %v1134, %v605
        %vm1191 = vcmp.ge.f32.partialorder %v1137, %v605
        %vm1192 = vcmp.ge.f32.partialorder %v1142, %v605
        %vm1193 = vcmp.ge.f32.partialorder %v1145, %v605
        %vm1194 = vcmp.ge.f32.partialorder %v1150, %v605
        %vm1195 = vcmp.ge.f32.partialorder %v1153, %v605
        %vm1196 = vcmp.ge.f32.partialorder %v1158, %v605
        %vm1197 = vcmp.ge.f32.partialorder %v1161, %v605
        %vm1198 = vcmp.ge.f32.partialorder %v1166, %v605
        %vm1199 = vcmp.ge.f32.partialorder %v1169, %v605
        %vm1200 = vcmp.ge.f32.partialorder %v1174, %v605
        %vm1201 = vcmp.ge.f32.partialorder %v1177, %v605
        %vm1202 = vcmp.ge.f32.partialorder %v1182, %v605
        %vm1203 = vcmp.ge.f32.partialorder %v1185, %v605
        %v1204 = vsel %vm1188, %v973, inf
        %v1205 = vsel %vm1189, %v977, inf
        %v1206 = vsel %vm1190, %v981, inf
        %v1207 = vsel %vm1191, %v985, inf
        %v1208 = vsel %vm1192, %v989, inf
        %v1209 = vsel %vm1193, %v993, inf
        %v1210 = vsel %vm1194, %v997, inf
        %v1211 = vsel %vm1195, %v1001, inf
        %v1212 = vsel %vm1196, %v1005, inf
        %v1213 = vsel %vm1197, %v1009, inf
        %v1214 = vsel %vm1198, %v1013, inf
        %v1215 = vsel %vm1199, %v1017, inf
        %v1216 = vsel %vm1200, %v1021, inf
        %v1217 = vsel %vm1201, %v1025, inf
        %v1218 = vsel %vm1202, %v1029, inf
        %v1219 = vsel %vm1203, %v1033, inf
        %v1220 = vsel %vm639, %v1204, inf
        %v1221 = vsel %vm639, %v1205, inf
        %v1222 = vsel %vm639, %v1206, inf
        %v1223 = vsel %vm639, %v1207, inf
        %v1224 = vsel %vm639, %v1208, inf
        %v1225 = vmin.f32 %v1220, %v1224
        %v1226 = vsel %vm639, %v1209, inf
        %v1227 = vmin.f32 %v1221, %v1226
        %v1228 = vsel %vm639, %v1210, inf
        %v1229 = vmin.f32 %v1222, %v1228
        %v1230 = vsel %vm639, %v1211, inf
        %v1231 = vmin.f32 %v1223, %v1230
        %v1232 = vsel %vm639, %v1212, inf
        %v1233 = vmin.f32 %v1225, %v1232
        %v1234 = vsel %vm639, %v1213, inf
        %v1235 = vmin.f32 %v1227, %v1234
        %v1236 = vsel %vm639, %v1214, inf
        %v1237 = vmin.f32 %v1229, %v1236
        %v1238 = vsel %vm639, %v1215, inf
        %v1239 = vmin.f32 %v1231, %v1238
        %v1240 = vsel %vm639, %v1216, inf
        %v1241 = vmin.f32 %v1233, %v1240
        %v1242 = vsel %vm639, %v1217, inf
        %v1243 = vmin.f32 %v1235, %v1242
        %v1244 = vsel %vm639, %v1218, inf
        %v1245 = vmin.f32 %v1237, %v1244
        %v1246 = vsel %vm639, %v1219, inf
        %v1247 = vmin.f32 %v1239, %v1246
        %v1248 = vmin.f32 %v1241, %v1243
        %v1249 = vmin.f32 %v1245, %v1247
        %v1250 = vmin.f32 %v1248, %v1249
        %v1251 = vrot.slane %v1250, 4
        %v1252 = vmin.f32 %v1250, %v1251
        %v1253 = vrot.slane %v1252, 2
        %v1254 = vmin.f32 %v1252, %v1253
        %v1255 = vrot.slane %v1254, 1
        %v1256 = vmin.f32 %v1254, %v1255
        %v1257 = vlaneseq
        %v1258 = vshrl.u32 %v1257, 7
        %v1259 = vsub.s32 3, %v1258
        %v1260 = vrot.slane %v282, %v1259
        %1261 = vset.pattern.permute.xlu0 3
        %1262 = vperm.xlu0 %1261, %v283
        %v1263 = vpop.permute.xlu0 %1262
        %1265 = vset.pattern.permute.xlu0 3
        %1266 = vperm.xlu0 %1265, %v284
        %v1267 = vpop.permute.xlu0 %1266
        %1269 = vset.pattern.permute.xlu0 3
        %1270 = vperm.xlu0 %1269, %v285
        %v1271 = vpop.permute.xlu0 %1270
        %1273 = vset.pattern.permute.xlu0 3
        %1274 = vperm.xlu0 %1273, %v286
        %v1275 = vpop.permute.xlu0 %1274
        %1277 = vset.pattern.permute.xlu0 3
        %1278 = vperm.xlu0 %1277, %v287
        %v1279 = vpop.permute.xlu0 %1278
        %1281 = vset.pattern.permute.xlu0 3
        %1282 = vperm.xlu0 %1281, %v288
        %v1283 = vpop.permute.xlu0 %1282
        %1285 = vset.pattern.permute.xlu0 3
        %1286 = vperm.xlu0 %1285, %v289
        %v1287 = vpop.permute.xlu0 %1286
        %1289 = vset.pattern.permute.xlu0 3
        %1290 = vperm.xlu0 %1289, %v290
        %v1291 = vpop.permute.xlu0 %1290
        %1293 = vset.pattern.permute.xlu0 3
        %1294 = vperm.xlu0 %1293, %v291
        %v1295 = vpop.permute.xlu0 %1294
        %1297 = vset.pattern.permute.xlu0 3
        %1298 = vperm.xlu0 %1297, %v292
        %v1299 = vpop.permute.xlu0 %1298
        %1301 = vset.pattern.permute.xlu0 3
        %1302 = vperm.xlu0 %1301, %v293
        %v1303 = vpop.permute.xlu0 %1302
        %1305 = vset.pattern.permute.xlu0 3
        %1306 = vperm.xlu0 %1305, %v294
        %v1307 = vpop.permute.xlu0 %1306
        %1309 = vset.pattern.permute.xlu0 3
        %1310 = vperm.xlu0 %1309, %v295
        %v1311 = vpop.permute.xlu0 %1310
        %1313 = vset.pattern.permute.xlu0 3
        %1314 = vperm.xlu0 %1313, %v296
        %v1315 = vpop.permute.xlu0 %1314
        %1317 = vset.pattern.permute.xlu0 3
        %1318 = vperm.xlu0 %1317, %v297
        %v1319 = vpop.permute.xlu0 %1318
        %1321 = vset.pattern.permute.xlu0 3
        %1322 = vperm.xlu0 %1321, %v298
        %v1323 = vpop.permute.xlu0 %1322
        %vm1325 = vcmp.le.f32.partialorder %v1260, %v1263
        %vm1326 = vcmp.le.f32.partialorder %v1260, %v1267
        %vm1327 = vcmp.le.f32.partialorder %v1260, %v1271
        %vm1328 = vcmp.le.f32.partialorder %v1260, %v1275
        %vm1329 = vcmp.le.f32.partialorder %v1260, %v1279
        %vm1330 = vcmp.le.f32.partialorder %v1260, %v1283
        %vm1331 = vcmp.le.f32.partialorder %v1260, %v1287
        %vm1332 = vcmp.le.f32.partialorder %v1260, %v1291
        %vm1333 = vcmp.le.f32.partialorder %v1260, %v1295
        %vm1334 = vcmp.le.f32.partialorder %v1260, %v1299
        %vm1335 = vcmp.le.f32.partialorder %v1260, %v1303
        %vm1336 = vcmp.le.f32.partialorder %v1260, %v1307
        %vm1337 = vcmp.le.f32.partialorder %v1260, %v1311
        %vm1338 = vcmp.le.f32.partialorder %v1260, %v1315
        %vm1339 = vcmp.le.f32.partialorder %v1260, %v1319
        %vm1340 = vcmp.le.f32.partialorder %v1260, %v1323
        %v1341 = vsel %vm1325, 1, 0
        %v1342 = vsel %vm1326, 1, 0
        %v1343 = vsel %vm1327, 1, 0
        %v1344 = vsel %vm1328, 1, 0
        %v1345 = vsel %vm1329, 1, 0
        %v1346 = vsel %vm1330, 1, 0
        %v1347 = vsel %vm1331, 1, 0
        %v1348 = vsel %vm1332, 1, 0
        %v1349 = vsel %vm1333, 1, 0
        %v1350 = vsel %vm1334, 1, 0
        %v1351 = vsel %vm1335, 1, 0
        %v1352 = vsel %vm1336, 1, 0
        %v1353 = vsel %vm1337, 1, 0
        %v1354 = vsel %vm1338, 1, 0
        %v1355 = vsel %vm1339, 1, 0
        %v1356 = vsel %vm1340, 1, 0
        %v1357 = vcvt.s32.f32 %v1341
        %v1358 = vcvt.s32.f32 %v1342
        %v1359 = vcvt.s32.f32 %v1343
        %v1360 = vcvt.s32.f32 %v1344
        %v1361 = vcvt.s32.f32 %v1345
        %v1362 = vcvt.s32.f32 %v1346
        %v1363 = vcvt.s32.f32 %v1347
        %v1364 = vcvt.s32.f32 %v1348
        %v1365 = vcvt.s32.f32 %v1349
        %v1366 = vcvt.s32.f32 %v1350
        %v1367 = vcvt.s32.f32 %v1351
        %v1368 = vcvt.s32.f32 %v1352
        %v1369 = vcvt.s32.f32 %v1353
        %v1370 = vcvt.s32.f32 %v1354
        %v1371 = vcvt.s32.f32 %v1355
        %v1372 = vcvt.s32.f32 %v1356
        %v1373 = vpack.c.bf16 %v1358, %v1357
        %v1374 = vpack.c.bf16 %v1360, %v1359
        %v1375 = vpack.c.bf16 %v1362, %v1361
        %v1376 = vpack.c.bf16 %v1364, %v1363
        %v1377 = vpack.c.bf16 %v1366, %v1365
        %v1378 = vpack.c.bf16 %v1368, %v1367
        %v1379 = vpack.c.bf16 %v1370, %v1369
        %v1380 = vpack.c.bf16 %v1372, %v1371
        %1381 = vmatprep.subr.bf16.mxu0 0
        %1382 = vmatpush1.bf16.msra.mxu0 %v488
        %1383 = vmatprep.subr.bf16.mxu0 0
        %1384 = vmatpush1.bf16.msra.mxu0 %v489
        %1385 = vmatprep.subr.bf16.mxu0 0
        %1386 = vmatpush1.bf16.msra.mxu0 %v490
        %1387 = vmatprep.subr.bf16.mxu0 0
        %1388 = vmatpush1.bf16.msra.mxu0 %v491
        %1389 = vmatprep.subr.bf16.mxu0 0
        %1390 = vmatpush1.bf16.msra.mxu0 %v492
        %1391 = vmatprep.subr.bf16.mxu0 0
        %1392 = vmatpush1.bf16.msra.mxu0 %v493
        %1393 = vmatprep.subr.bf16.mxu0 0
        %1394 = vmatpush1.bf16.msra.mxu0 %v494
        %1395 = vmatprep.subr.bf16.mxu0 0
        %1396 = vmatpush1.bf16.msra.mxu0 %v495
        %1397 = vmatprep.subr.bf16.mxu0 0
        %1398 = vmatpush1.bf16.msra.mxu0 0
        %1399 = vmatprep.subr.bf16.mxu0 0
        %1400 = vmatpush1.bf16.msra.mxu0 0
        %1401 = vmatprep.subr.bf16.mxu0 0
        %1402 = vmatpush1.bf16.msra.mxu0 0
        %1403 = vmatprep.subr.bf16.mxu0 0
        %1404 = vmatpush1.bf16.msra.mxu0 0
        %1405 = vmatprep.subr.bf16.mxu0 0
        %1406 = vmatpush1.bf16.msra.mxu0 0
        %1407 = vmatprep.subr.bf16.mxu0 0
        %1408 = vmatpush1.bf16.msra.mxu0 0
        %1409 = vmatprep.subr.bf16.mxu0 0
        %1410 = vmatpush1.bf16.msra.mxu0 0
        %1411 = vmatprep.subr.bf16.mxu0 0
        %1412 = vmatpush1.bf16.msra.mxu0 0
        %1413 = vmatprep.mubr.bf16.mxu0 0
        %1414 = vmatmul.mubr.bf16.gmra.mrb[0].mxu0 %v1373
        %v1415 = vpop.f32.mrb[0].mxu0
        %v1416 = vadd.f32 0.0, %v1415
        %v1417 = vpop.f32.mrb[0].mxu0
        %v1418 = vpop.f32.mrb[0].mxu0
        %v1419 = vadd.f32 0.0, %v1418
        %v1420 = vpop.f32.mrb[0].mxu0
        %1421 = vmatprep.mubr.bf16.mxu0 0
        %1422 = vmatmul.mubr.bf16.gmra.mrb[0].mxu0 %v1374
        %v1423 = vpop.f32.mrb[0].mxu0
        %v1424 = vadd.f32 0.0, %v1423
        %v1425 = vpop.f32.mrb[0].mxu0
        %v1426 = vpop.f32.mrb[0].mxu0
        %v1427 = vadd.f32 0.0, %v1426
        %v1428 = vpop.f32.mrb[0].mxu0
        %1429 = vmatprep.mubr.bf16.mxu0 0
        %1430 = vmatmul.mubr.bf16.gmra.mrb[0].mxu0 %v1375
        %v1431 = vpop.f32.mrb[0].mxu0
        %v1432 = vadd.f32 0.0, %v1431
        %v1433 = vpop.f32.mrb[0].mxu0
        %v1434 = vpop.f32.mrb[0].mxu0
        %v1435 = vadd.f32 0.0, %v1434
        %v1436 = vpop.f32.mrb[0].mxu0
        %1437 = vmatprep.mubr.bf16.mxu0 0
        %1438 = vmatmul.mubr.bf16.gmra.mrb[0].mxu0 %v1376
        %v1439 = vpop.f32.mrb[0].mxu0
        %v1440 = vadd.f32 0.0, %v1439
        %v1441 = vpop.f32.mrb[0].mxu0
        %v1442 = vpop.f32.mrb[0].mxu0
        %v1443 = vadd.f32 0.0, %v1442
        %v1444 = vpop.f32.mrb[0].mxu0
        %1445 = vmatprep.mubr.bf16.mxu0 0
        %1446 = vmatmul.mubr.bf16.gmra.mrb[0].mxu0 %v1377
        %v1447 = vpop.f32.mrb[0].mxu0
        %v1448 = vadd.f32 0.0, %v1447
        %v1449 = vpop.f32.mrb[0].mxu0
        %v1450 = vpop.f32.mrb[0].mxu0
        %v1451 = vadd.f32 0.0, %v1450
        %v1452 = vpop.f32.mrb[0].mxu0
        %1453 = vmatprep.mubr.bf16.mxu0 0
        %1454 = vmatmul.mubr.bf16.gmra.mrb[0].mxu0 %v1378
        %v1455 = vpop.f32.mrb[0].mxu0
        %v1456 = vadd.f32 0.0, %v1455
        %v1457 = vpop.f32.mrb[0].mxu0
        %v1458 = vpop.f32.mrb[0].mxu0
        %v1459 = vadd.f32 0.0, %v1458
        %v1460 = vpop.f32.mrb[0].mxu0
        %1461 = vmatprep.mubr.bf16.mxu0 0
        %1462 = vmatmul.mubr.bf16.gmra.mrb[0].mxu0 %v1379
        %v1463 = vpop.f32.mrb[0].mxu0
        %v1464 = vadd.f32 0.0, %v1463
        %v1465 = vpop.f32.mrb[0].mxu0
        %v1466 = vpop.f32.mrb[0].mxu0
        %v1467 = vadd.f32 0.0, %v1466
        %v1468 = vpop.f32.mrb[0].mxu0
        %1469 = vmatprep.mubr.bf16.mxu0 0
        %1470 = vmatmul.mubr.bf16.gmra.mrb[0].mxu0 %v1380
        %v1471 = vpop.f32.mrb[0].mxu0
        %v1472 = vadd.f32 0.0, %v1471
        %v1473 = vpop.f32.mrb[0].mxu0
        %v1474 = vpop.f32.mrb[0].mxu0
        %v1475 = vadd.f32 0.0, %v1474
        %v1476 = vpop.f32.mrb[0].mxu0
        %1477 = vdwg.mxu0
        %vm1478 = vcmp.ge.f32.partialorder %v1416, %v605
        %vm1479 = vcmp.ge.f32.partialorder %v1419, %v605
        %vm1480 = vcmp.ge.f32.partialorder %v1424, %v605
        %vm1481 = vcmp.ge.f32.partialorder %v1427, %v605
        %vm1482 = vcmp.ge.f32.partialorder %v1432, %v605
        %vm1483 = vcmp.ge.f32.partialorder %v1435, %v605
        %vm1484 = vcmp.ge.f32.partialorder %v1440, %v605
        %vm1485 = vcmp.ge.f32.partialorder %v1443, %v605
        %vm1486 = vcmp.ge.f32.partialorder %v1448, %v605
        %vm1487 = vcmp.ge.f32.partialorder %v1451, %v605
        %vm1488 = vcmp.ge.f32.partialorder %v1456, %v605
        %vm1489 = vcmp.ge.f32.partialorder %v1459, %v605
        %vm1490 = vcmp.ge.f32.partialorder %v1464, %v605
        %vm1491 = vcmp.ge.f32.partialorder %v1467, %v605
        %vm1492 = vcmp.ge.f32.partialorder %v1472, %v605
        %vm1493 = vcmp.ge.f32.partialorder %v1475, %v605
        %v1494 = vsel %vm1478, %v1263, inf
        %v1495 = vsel %vm1479, %v1267, inf
        %v1496 = vsel %vm1480, %v1271, inf
        %v1497 = vsel %vm1481, %v1275, inf
        %v1498 = vsel %vm1482, %v1279, inf
        %v1499 = vsel %vm1483, %v1283, inf
        %v1500 = vsel %vm1484, %v1287, inf
        %v1501 = vsel %vm1485, %v1291, inf
        %v1502 = vsel %vm1486, %v1295, inf
        %v1503 = vsel %vm1487, %v1299, inf
        %v1504 = vsel %vm1488, %v1303, inf
        %v1505 = vsel %vm1489, %v1307, inf
        %v1506 = vsel %vm1490, %v1311, inf
        %v1507 = vsel %vm1491, %v1315, inf
        %v1508 = vsel %vm1492, %v1319, inf
        %v1509 = vsel %vm1493, %v1323, inf
        %v1510 = vsel %vm639, %v1494, inf
        %v1511 = vsel %vm639, %v1495, inf
        %v1512 = vsel %vm639, %v1496, inf
        %v1513 = vsel %vm639, %v1497, inf
        %v1514 = vsel %vm639, %v1498, inf
        %v1515 = vmin.f32 %v1510, %v1514
        %v1516 = vsel %vm639, %v1499, inf
        %v1517 = vmin.f32 %v1511, %v1516
        %v1518 = vsel %vm639, %v1500, inf
        %v1519 = vmin.f32 %v1512, %v1518
        %v1520 = vsel %vm639, %v1501, inf
        %v1521 = vmin.f32 %v1513, %v1520
        %v1522 = vsel %vm639, %v1502, inf
        %v1523 = vmin.f32 %v1515, %v1522
        %v1524 = vsel %vm639, %v1503, inf
        %v1525 = vmin.f32 %v1517, %v1524
        %v1526 = vsel %vm639, %v1504, inf
        %v1527 = vmin.f32 %v1519, %v1526
        %v1528 = vsel %vm639, %v1505, inf
        %v1529 = vmin.f32 %v1521, %v1528
        %v1530 = vsel %vm639, %v1506, inf
        %v1531 = vmin.f32 %v1523, %v1530
        %v1532 = vsel %vm639, %v1507, inf
        %v1533 = vmin.f32 %v1525, %v1532
        %v1534 = vsel %vm639, %v1508, inf
        %v1535 = vmin.f32 %v1527, %v1534
        %v1536 = vsel %vm639, %v1509, inf
        %v1537 = vmin.f32 %v1529, %v1536
        %v1538 = vmin.f32 %v1531, %v1533
        %v1539 = vmin.f32 %v1535, %v1537
        %v1540 = vmin.f32 %v1538, %v1539
        %v1541 = vrot.slane %v1540, 4
        %v1542 = vmin.f32 %v1540, %v1541
        %v1543 = vrot.slane %v1542, 2
        %v1544 = vmin.f32 %v1542, %v1543
        %v1545 = vrot.slane %v1544, 1
        %v1546 = vmin.f32 %v1544, %v1545
        %v1547 = vlaneseq
        %v1548 = vshrl.u32 %v1547, 7
        %v1549 = vsub.s32 4, %v1548
        %v1550 = vrot.slane %v282, %v1549
        %1551 = vset.pattern.permute.xlu0 4
        %1552 = vperm.xlu0 %1551, %v283
        %v1553 = vpop.permute.xlu0 %1552
        %1555 = vset.pattern.permute.xlu0 4
        %1556 = vperm.xlu0 %1555, %v284
        %v1557 = vpop.permute.xlu0 %1556
        %1559 = vset.pattern.permute.xlu0 4
        %1560 = vperm.xlu0 %1559, %v285
        %v1561 = vpop.permute.xlu0 %1560
        %1563 = vset.pattern.permute.xlu0 4
        %1564 = vperm.xlu0 %1563, %v286
        %v1565 = vpop.permute.xlu0 %1564
        %1567 = vset.pattern.permute.xlu0 4
        %1568 = vperm.xlu0 %1567, %v287
        %v1569 = vpop.permute.xlu0 %1568
        %1571 = vset.pattern.permute.xlu0 4
        %1572 = vperm.xlu0 %1571, %v288
        %v1573 = vpop.permute.xlu0 %1572
        %1575 = vset.pattern.permute.xlu0 4
        %1576 = vperm.xlu0 %1575, %v289
        %v1577 = vpop.permute.xlu0 %1576
        %1579 = vset.pattern.permute.xlu0 4
        %1580 = vperm.xlu0 %1579, %v290
        %v1581 = vpop.permute.xlu0 %1580
        %1583 = vset.pattern.permute.xlu0 4
        %1584 = vperm.xlu0 %1583, %v291
        %v1585 = vpop.permute.xlu0 %1584
        %1587 = vset.pattern.permute.xlu0 4
        %1588 = vperm.xlu0 %1587, %v292
        %v1589 = vpop.permute.xlu0 %1588
        %1591 = vset.pattern.permute.xlu0 4
        %1592 = vperm.xlu0 %1591, %v293
        %v1593 = vpop.permute.xlu0 %1592
        %1595 = vset.pattern.permute.xlu0 4
        %1596 = vperm.xlu0 %1595, %v294
        %v1597 = vpop.permute.xlu0 %1596
        %1599 = vset.pattern.permute.xlu0 4
        %1600 = vperm.xlu0 %1599, %v295
        %v1601 = vpop.permute.xlu0 %1600
        %1603 = vset.pattern.permute.xlu0 4
        %1604 = vperm.xlu0 %1603, %v296
        %v1605 = vpop.permute.xlu0 %1604
        %1607 = vset.pattern.permute.xlu0 4
        %1608 = vperm.xlu0 %1607, %v297
        %v1609 = vpop.permute.xlu0 %1608
        %1611 = vset.pattern.permute.xlu0 4
        %1612 = vperm.xlu0 %1611, %v298
        %v1613 = vpop.permute.xlu0 %1612
        %vm1615 = vcmp.le.f32.partialorder %v1550, %v1553
        %vm1616 = vcmp.le.f32.partialorder %v1550, %v1557
        %vm1617 = vcmp.le.f32.partialorder %v1550, %v1561
        %vm1618 = vcmp.le.f32.partialorder %v1550, %v1565
        %vm1619 = vcmp.le.f32.partialorder %v1550, %v1569
        %vm1620 = vcmp.le.f32.partialorder %v1550, %v1573
        %vm1621 = vcmp.le.f32.partialorder %v1550, %v1577
        %vm1622 = vcmp.le.f32.partialorder %v1550, %v1581
        %vm1623 = vcmp.le.f32.partialorder %v1550, %v1585
        %vm1624 = vcmp.le.f32.partialorder %v1550, %v1589
        %vm1625 = vcmp.le.f32.partialorder %v1550, %v1593
        %vm1626 = vcmp.le.f32.partialorder %v1550, %v1597
        %vm1627 = vcmp.le.f32.partialorder %v1550, %v1601
        %vm1628 = vcmp.le.f32.partialorder %v1550, %v1605
        %vm1629 = vcmp.le.f32.partialorder %v1550, %v1609
        %vm1630 = vcmp.le.f32.partialorder %v1550, %v1613
        %v1631 = vsel %vm1615, 1, 0
        %v1632 = vsel %vm1616, 1, 0
        %v1633 = vsel %vm1617, 1, 0
        %v1634 = vsel %vm1618, 1, 0
        %v1635 = vsel %vm1619, 1, 0
        %v1636 = vsel %vm1620, 1, 0
        %v1637 = vsel %vm1621, 1, 0
        %v1638 = vsel %vm1622, 1, 0
        %v1639 = vsel %vm1623, 1, 0
        %v1640 = vsel %vm1624, 1, 0
        %v1641 = vsel %vm1625, 1, 0
        %v1642 = vsel %vm1626, 1, 0
        %v1643 = vsel %vm1627, 1, 0
        %v1644 = vsel %vm1628, 1, 0
        %v1645 = vsel %vm1629, 1, 0
        %v1646 = vsel %vm1630, 1, 0
        %v1647 = vcvt.s32.f32 %v1631
        %v1648 = vcvt.s32.f32 %v1632
        %v1649 = vcvt.s32.f32 %v1633
        %v1650 = vcvt.s32.f32 %v1634
        %v1651 = vcvt.s32.f32 %v1635
        %v1652 = vcvt.s32.f32 %v1636
        %v1653 = vcvt.s32.f32 %v1637
        %v1654 = vcvt.s32.f32 %v1638
        %v1655 = vcvt.s32.f32 %v1639
        %v1656 = vcvt.s32.f32 %v1640
        %v1657 = vcvt.s32.f32 %v1641
        %v1658 = vcvt.s32.f32 %v1642
        %v1659 = vcvt.s32.f32 %v1643
        %v1660 = vcvt.s32.f32 %v1644
        %v1661 = vcvt.s32.f32 %v1645
        %v1662 = vcvt.s32.f32 %v1646
        %v1663 = vpack.c.bf16 %v1648, %v1647
        %v1664 = vpack.c.bf16 %v1650, %v1649
        %v1665 = vpack.c.bf16 %v1652, %v1651
        %v1666 = vpack.c.bf16 %v1654, %v1653
        %v1667 = vpack.c.bf16 %v1656, %v1655
        %v1668 = vpack.c.bf16 %v1658, %v1657
        %v1669 = vpack.c.bf16 %v1660, %v1659
        %v1670 = vpack.c.bf16 %v1662, %v1661
        %1671 = vmatprep.subr.bf16.mxu0 0
        %1672 = vmatpush1.bf16.msra.mxu0 %v488
        %1673 = vmatprep.subr.bf16.mxu0 0
        %1674 = vmatpush1.bf16.msra.mxu0 %v489
        %1675 = vmatprep.subr.bf16.mxu0 0
        %1676 = vmatpush1.bf16.msra.mxu0 %v490
        %1677 = vmatprep.subr.bf16.mxu0 0
        %1678 = vmatpush1.bf16.msra.mxu0 %v491
        %1679 = vmatprep.subr.bf16.mxu0 0
        %1680 = vmatpush1.bf16.msra.mxu0 %v492
        %1681 = vmatprep.subr.bf16.mxu0 0
        %1682 = vmatpush1.bf16.msra.mxu0 %v493
        %1683 = vmatprep.subr.bf16.mxu0 0
        %1684 = vmatpush1.bf16.msra.mxu0 %v494
        %1685 = vmatprep.subr.bf16.mxu0 0
        %1686 = vmatpush1.bf16.msra.mxu0 %v495
        %1687 = vmatprep.subr.bf16.mxu0 0
        %1688 = vmatpush1.bf16.msra.mxu0 0
        %1689 = vmatprep.subr.bf16.mxu0 0
        %1690 = vmatpush1.bf16.msra.mxu0 0
        %1691 = vmatprep.subr.bf16.mxu0 0
        %1692 = vmatpush1.bf16.msra.mxu0 0
        %1693 = vmatprep.subr.bf16.mxu0 0
        %1694 = vmatpush1.bf16.msra.mxu0 0
        %1695 = vmatprep.subr.bf16.mxu0 0
        %1696 = vmatpush1.bf16.msra.mxu0 0
        %1697 = vmatprep.subr.bf16.mxu0 0
        %1698 = vmatpush1.bf16.msra.mxu0 0
        %1699 = vmatprep.subr.bf16.mxu0 0
        %1700 = vmatpush1.bf16.msra.mxu0 0
        %1701 = vmatprep.subr.bf16.mxu0 0
        %1702 = vmatpush1.bf16.msra.mxu0 0
        %1703 = vmatprep.mubr.bf16.mxu0 0
        %1704 = vmatmul.mubr.bf16.gmra.mrb[0].mxu0 %v1663
        %v1705 = vpop.f32.mrb[0].mxu0
        %v1706 = vadd.f32 0.0, %v1705
        %v1707 = vpop.f32.mrb[0].mxu0
        %v1708 = vpop.f32.mrb[0].mxu0
        %v1709 = vadd.f32 0.0, %v1708
        %v1710 = vpop.f32.mrb[0].mxu0
        %1711 = vmatprep.mubr.bf16.mxu0 0
        %1712 = vmatmul.mubr.bf16.gmra.mrb[0].mxu0 %v1664
        %v1713 = vpop.f32.mrb[0].mxu0
        %v1714 = vadd.f32 0.0, %v1713
        %v1715 = vpop.f32.mrb[0].mxu0
        %v1716 = vpop.f32.mrb[0].mxu0
        %v1717 = vadd.f32 0.0, %v1716
        %v1718 = vpop.f32.mrb[0].mxu0
        %1719 = vmatprep.mubr.bf16.mxu0 0
        %1720 = vmatmul.mubr.bf16.gmra.mrb[0].mxu0 %v1665
        %v1721 = vpop.f32.mrb[0].mxu0
        %v1722 = vadd.f32 0.0, %v1721
        %v1723 = vpop.f32.mrb[0].mxu0
        %v1724 = vpop.f32.mrb[0].mxu0
        %v1725 = vadd.f32 0.0, %v1724
        %v1726 = vpop.f32.mrb[0].mxu0
        %1727 = vmatprep.mubr.bf16.mxu0 0
        %1728 = vmatmul.mubr.bf16.gmra.mrb[0].mxu0 %v1666
        %v1729 = vpop.f32.mrb[0].mxu0
        %v1730 = vadd.f32 0.0, %v1729
        %v1731 = vpop.f32.mrb[0].mxu0
        %v1732 = vpop.f32.mrb[0].mxu0
        %v1733 = vadd.f32 0.0, %v1732
        %v1734 = vpop.f32.mrb[0].mxu0
        %1735 = vmatprep.mubr.bf16.mxu0 0
        %1736 = vmatmul.mubr.bf16.gmra.mrb[0].mxu0 %v1667
        %v1737 = vpop.f32.mrb[0].mxu0
        %v1738 = vadd.f32 0.0, %v1737
        %v1739 = vpop.f32.mrb[0].mxu0
        %v1740 = vpop.f32.mrb[0].mxu0
        %v1741 = vadd.f32 0.0, %v1740
        %v1742 = vpop.f32.mrb[0].mxu0
        %1743 = vmatprep.mubr.bf16.mxu0 0
        %1744 = vmatmul.mubr.bf16.gmra.mrb[0].mxu0 %v1668
        %v1745 = vpop.f32.mrb[0].mxu0
        %v1746 = vadd.f32 0.0, %v1745
        %v1747 = vpop.f32.mrb[0].mxu0
        %v1748 = vpop.f32.mrb[0].mxu0
        %v1749 = vadd.f32 0.0, %v1748
        %v1750 = vpop.f32.mrb[0].mxu0
        %1751 = vmatprep.mubr.bf16.mxu0 0
        %1752 = vmatmul.mubr.bf16.gmra.mrb[0].mxu0 %v1669
        %v1753 = vpop.f32.mrb[0].mxu0
        %v1754 = vadd.f32 0.0, %v1753
        %v1755 = vpop.f32.mrb[0].mxu0
        %v1756 = vpop.f32.mrb[0].mxu0
        %v1757 = vadd.f32 0.0, %v1756
        %v1758 = vpop.f32.mrb[0].mxu0
        %1759 = vmatprep.mubr.bf16.mxu0 0
        %1760 = vmatmul.mubr.bf16.gmra.mrb[0].mxu0 %v1670
        %v1761 = vpop.f32.mrb[0].mxu0
        %v1762 = vadd.f32 0.0, %v1761
        %v1763 = vpop.f32.mrb[0].mxu0
        %v1764 = vpop.f32.mrb[0].mxu0
        %v1765 = vadd.f32 0.0, %v1764
        %v1766 = vpop.f32.mrb[0].mxu0
        %1767 = vdwg.mxu0
        %vm1768 = vcmp.ge.f32.partialorder %v1706, %v605
        %vm1769 = vcmp.ge.f32.partialorder %v1709, %v605
        %vm1770 = vcmp.ge.f32.partialorder %v1714, %v605
        %vm1771 = vcmp.ge.f32.partialorder %v1717, %v605
        %vm1772 = vcmp.ge.f32.partialorder %v1722, %v605
        %vm1773 = vcmp.ge.f32.partialorder %v1725, %v605
        %vm1774 = vcmp.ge.f32.partialorder %v1730, %v605
        %vm1775 = vcmp.ge.f32.partialorder %v1733, %v605
        %vm1776 = vcmp.ge.f32.partialorder %v1738, %v605
        %vm1777 = vcmp.ge.f32.partialorder %v1741, %v605
        %vm1778 = vcmp.ge.f32.partialorder %v1746, %v605
        %vm1779 = vcmp.ge.f32.partialorder %v1749, %v605
        %vm1780 = vcmp.ge.f32.partialorder %v1754, %v605
        %vm1781 = vcmp.ge.f32.partialorder %v1757, %v605
        %vm1782 = vcmp.ge.f32.partialorder %v1762, %v605
        %vm1783 = vcmp.ge.f32.partialorder %v1765, %v605
        %v1784 = vsel %vm1768, %v1553, inf
        %v1785 = vsel %vm1769, %v1557, inf
        %v1786 = vsel %vm1770, %v1561, inf
        %v1787 = vsel %vm1771, %v1565, inf
        %v1788 = vsel %vm1772, %v1569, inf
        %v1789 = vsel %vm1773, %v1573, inf
        %v1790 = vsel %vm1774, %v1577, inf
        %v1791 = vsel %vm1775, %v1581, inf
        %v1792 = vsel %vm1776, %v1585, inf
        %v1793 = vsel %vm1777, %v1589, inf
        %v1794 = vsel %vm1778, %v1593, inf
        %v1795 = vsel %vm1779, %v1597, inf
        %v1796 = vsel %vm1780, %v1601, inf
        %v1797 = vsel %vm1781, %v1605, inf
        %v1798 = vsel %vm1782, %v1609, inf
        %v1799 = vsel %vm1783, %v1613, inf
        %v1800 = vsel %vm639, %v1784, inf
        %v1801 = vsel %vm639, %v1785, inf
        %v1802 = vsel %vm639, %v1786, inf
        %v1803 = vsel %vm639, %v1787, inf
        %v1804 = vsel %vm639, %v1788, inf
        %v1805 = vmin.f32 %v1800, %v1804
        %v1806 = vsel %vm639, %v1789, inf
        %v1807 = vmin.f32 %v1801, %v1806
        %v1808 = vsel %vm639, %v1790, inf
        %v1809 = vmin.f32 %v1802, %v1808
        %v1810 = vsel %vm639, %v1791, inf
        %v1811 = vmin.f32 %v1803, %v1810
        %v1812 = vsel %vm639, %v1792, inf
        %v1813 = vmin.f32 %v1805, %v1812
        %v1814 = vsel %vm639, %v1793, inf
        %v1815 = vmin.f32 %v1807, %v1814
        %v1816 = vsel %vm639, %v1794, inf
        %v1817 = vmin.f32 %v1809, %v1816
        %v1818 = vsel %vm639, %v1795, inf
        %v1819 = vmin.f32 %v1811, %v1818
        %v1820 = vsel %vm639, %v1796, inf
        %v1821 = vmin.f32 %v1813, %v1820
        %v1822 = vsel %vm639, %v1797, inf
        %v1823 = vmin.f32 %v1815, %v1822
        %v1824 = vsel %vm639, %v1798, inf
        %v1825 = vmin.f32 %v1817, %v1824
        %v1826 = vsel %vm639, %v1799, inf
        %v1827 = vmin.f32 %v1819, %v1826
        %v1828 = vmin.f32 %v1821, %v1823
        %v1829 = vmin.f32 %v1825, %v1827
        %v1830 = vmin.f32 %v1828, %v1829
        %v1831 = vrot.slane %v1830, 4
        %v1832 = vmin.f32 %v1830, %v1831
        %v1833 = vrot.slane %v1832, 2
        %v1834 = vmin.f32 %v1832, %v1833
        %v1835 = vrot.slane %v1834, 1
        %v1836 = vmin.f32 %v1834, %v1835
        %v1837 = vlaneseq
        %v1838 = vshrl.u32 %v1837, 7
        %v1839 = vsub.s32 5, %v1838
        %v1840 = vrot.slane %v282, %v1839
        %1841 = vset.pattern.permute.xlu0 5
        %1842 = vperm.xlu0 %1841, %v283
        %v1843 = vpop.permute.xlu0 %1842
        %1845 = vset.pattern.permute.xlu0 5
        %1846 = vperm.xlu0 %1845, %v284
        %v1847 = vpop.permute.xlu0 %1846
        %1849 = vset.pattern.permute.xlu0 5
        %1850 = vperm.xlu0 %1849, %v285
        %v1851 = vpop.permute.xlu0 %1850
        %1853 = vset.pattern.permute.xlu0 5
        %1854 = vperm.xlu0 %1853, %v286
        %v1855 = vpop.permute.xlu0 %1854
        %1857 = vset.pattern.permute.xlu0 5
        %1858 = vperm.xlu0 %1857, %v287
        %v1859 = vpop.permute.xlu0 %1858
        %1861 = vset.pattern.permute.xlu0 5
        %1862 = vperm.xlu0 %1861, %v288
        %v1863 = vpop.permute.xlu0 %1862
        %1865 = vset.pattern.permute.xlu0 5
        %1866 = vperm.xlu0 %1865, %v289
        %v1867 = vpop.permute.xlu0 %1866
        %1869 = vset.pattern.permute.xlu0 5
        %1870 = vperm.xlu0 %1869, %v290
        %v1871 = vpop.permute.xlu0 %1870
        %1873 = vset.pattern.permute.xlu0 5
        %1874 = vperm.xlu0 %1873, %v291
        %v1875 = vpop.permute.xlu0 %1874
        %1877 = vset.pattern.permute.xlu0 5
        %1878 = vperm.xlu0 %1877, %v292
        %v1879 = vpop.permute.xlu0 %1878
        %1881 = vset.pattern.permute.xlu0 5
        %1882 = vperm.xlu0 %1881, %v293
        %v1883 = vpop.permute.xlu0 %1882
        %1885 = vset.pattern.permute.xlu0 5
        %1886 = vperm.xlu0 %1885, %v294
        %v1887 = vpop.permute.xlu0 %1886
        %1889 = vset.pattern.permute.xlu0 5
        %1890 = vperm.xlu0 %1889, %v295
        %v1891 = vpop.permute.xlu0 %1890
        %1893 = vset.pattern.permute.xlu0 5
        %1894 = vperm.xlu0 %1893, %v296
        %v1895 = vpop.permute.xlu0 %1894
        %1897 = vset.pattern.permute.xlu0 5
        %1898 = vperm.xlu0 %1897, %v297
        %v1899 = vpop.permute.xlu0 %1898
        %1901 = vset.pattern.permute.xlu0 5
        %1902 = vperm.xlu0 %1901, %v298
        %v1903 = vpop.permute.xlu0 %1902
        %vm1905 = vcmp.le.f32.partialorder %v1840, %v1843
        %vm1906 = vcmp.le.f32.partialorder %v1840, %v1847
        %vm1907 = vcmp.le.f32.partialorder %v1840, %v1851
        %vm1908 = vcmp.le.f32.partialorder %v1840, %v1855
        %vm1909 = vcmp.le.f32.partialorder %v1840, %v1859
        %vm1910 = vcmp.le.f32.partialorder %v1840, %v1863
        %vm1911 = vcmp.le.f32.partialorder %v1840, %v1867
        %vm1912 = vcmp.le.f32.partialorder %v1840, %v1871
        %vm1913 = vcmp.le.f32.partialorder %v1840, %v1875
        %vm1914 = vcmp.le.f32.partialorder %v1840, %v1879
        %vm1915 = vcmp.le.f32.partialorder %v1840, %v1883
        %vm1916 = vcmp.le.f32.partialorder %v1840, %v1887
        %vm1917 = vcmp.le.f32.partialorder %v1840, %v1891
        %vm1918 = vcmp.le.f32.partialorder %v1840, %v1895
        %vm1919 = vcmp.le.f32.partialorder %v1840, %v1899
        %vm1920 = vcmp.le.f32.partialorder %v1840, %v1903
        %v1921 = vsel %vm1905, 1, 0
        %v1922 = vsel %vm1906, 1, 0
        %v1923 = vsel %vm1907, 1, 0
        %v1924 = vsel %vm1908, 1, 0
        %v1925 = vsel %vm1909, 1, 0
        %v1926 = vsel %vm1910, 1, 0
        %v1927 = vsel %vm1911, 1, 0
        %v1928 = vsel %vm1912, 1, 0
        %v1929 = vsel %vm1913, 1, 0
        %v1930 = vsel %vm1914, 1, 0
        %v1931 = vsel %vm1915, 1, 0
        %v1932 = vsel %vm1916, 1, 0
        %v1933 = vsel %vm1917, 1, 0
        %v1934 = vsel %vm1918, 1, 0
        %v1935 = vsel %vm1919, 1, 0
        %v1936 = vsel %vm1920, 1, 0
        %v1937 = vcvt.s32.f32 %v1921
        %v1938 = vcvt.s32.f32 %v1922
        %v1939 = vcvt.s32.f32 %v1923
        %v1940 = vcvt.s32.f32 %v1924
        %v1941 = vcvt.s32.f32 %v1925
        %v1942 = vcvt.s32.f32 %v1926
        %v1943 = vcvt.s32.f32 %v1927
        %v1944 = vcvt.s32.f32 %v1928
        %v1945 = vcvt.s32.f32 %v1929
        %v1946 = vcvt.s32.f32 %v1930
        %v1947 = vcvt.s32.f32 %v1931
        %v1948 = vcvt.s32.f32 %v1932
        %v1949 = vcvt.s32.f32 %v1933
        %v1950 = vcvt.s32.f32 %v1934
        %v1951 = vcvt.s32.f32 %v1935
        %v1952 = vcvt.s32.f32 %v1936
        %v1953 = vpack.c.bf16 %v1938, %v1937
        %v1954 = vpack.c.bf16 %v1940, %v1939
        %v1955 = vpack.c.bf16 %v1942, %v1941
        %v1956 = vpack.c.bf16 %v1944, %v1943
        %v1957 = vpack.c.bf16 %v1946, %v1945
        %v1958 = vpack.c.bf16 %v1948, %v1947
        %v1959 = vpack.c.bf16 %v1950, %v1949
        %v1960 = vpack.c.bf16 %v1952, %v1951
        %1961 = vmatprep.subr.bf16.mxu0 0
        %1962 = vmatpush1.bf16.msra.mxu0 %v488
        %1963 = vmatprep.subr.bf16.mxu0 0
        %1964 = vmatpush1.bf16.msra.mxu0 %v489
        %1965 = vmatprep.subr.bf16.mxu0 0
        %1966 = vmatpush1.bf16.msra.mxu0 %v490
        %1967 = vmatprep.subr.bf16.mxu0 0
        %1968 = vmatpush1.bf16.msra.mxu0 %v491
        %1969 = vmatprep.subr.bf16.mxu0 0
        %1970 = vmatpush1.bf16.msra.mxu0 %v492
        %1971 = vmatprep.subr.bf16.mxu0 0
        %1972 = vmatpush1.bf16.msra.mxu0 %v493
        %1973 = vmatprep.subr.bf16.mxu0 0
        %1974 = vmatpush1.bf16.msra.mxu0 %v494
        %1975 = vmatprep.subr.bf16.mxu0 0
        %1976 = vmatpush1.bf16.msra.mxu0 %v495
        %1977 = vmatprep.subr.bf16.mxu0 0
        %1978 = vmatpush1.bf16.msra.mxu0 0
        %1979 = vmatprep.subr.bf16.mxu0 0
        %1980 = vmatpush1.bf16.msra.mxu0 0
        %1981 = vmatprep.subr.bf16.mxu0 0
        %1982 = vmatpush1.bf16.msra.mxu0 0
        %1983 = vmatprep.subr.bf16.mxu0 0
        %1984 = vmatpush1.bf16.msra.mxu0 0
        %1985 = vmatprep.subr.bf16.mxu0 0
        %1986 = vmatpush1.bf16.msra.mxu0 0
        %1987 = vmatprep.subr.bf16.mxu0 0
        %1988 = vmatpush1.bf16.msra.mxu0 0
        %1989 = vmatprep.subr.bf16.mxu0 0
        %1990 = vmatpush1.bf16.msra.mxu0 0
        %1991 = vmatprep.subr.bf16.mxu0 0
        %1992 = vmatpush1.bf16.msra.mxu0 0
        %1993 = vmatprep.mubr.bf16.mxu0 0
        %1994 = vmatmul.mubr.bf16.gmra.mrb[0].mxu0 %v1953
        %v1995 = vpop.f32.mrb[0].mxu0
        %v1996 = vadd.f32 0.0, %v1995
        %v1997 = vpop.f32.mrb[0].mxu0
        %v1998 = vpop.f32.mrb[0].mxu0
        %v1999 = vadd.f32 0.0, %v1998
        %v2000 = vpop.f32.mrb[0].mxu0
        %2001 = vmatprep.mubr.bf16.mxu0 0
        %2002 = vmatmul.mubr.bf16.gmra.mrb[0].mxu0 %v1954
        %v2003 = vpop.f32.mrb[0].mxu0
        %v2004 = vadd.f32 0.0, %v2003
        %v2005 = vpop.f32.mrb[0].mxu0
        %v2006 = vpop.f32.mrb[0].mxu0
        %v2007 = vadd.f32 0.0, %v2006
        %v2008 = vpop.f32.mrb[0].mxu0
        %2009 = vmatprep.mubr.bf16.mxu0 0
        %2010 = vmatmul.mubr.bf16.gmra.mrb[0].mxu0 %v1955
        %v2011 = vpop.f32.mrb[0].mxu0
        %v2012 = vadd.f32 0.0, %v2011
        %v2013 = vpop.f32.mrb[0].mxu0
        %v2014 = vpop.f32.mrb[0].mxu0
        %v2015 = vadd.f32 0.0, %v2014
        %v2016 = vpop.f32.mrb[0].mxu0
        %2017 = vmatprep.mubr.bf16.mxu0 0
        %2018 = vmatmul.mubr.bf16.gmra.mrb[0].mxu0 %v1956
        %v2019 = vpop.f32.mrb[0].mxu0
        %v2020 = vadd.f32 0.0, %v2019
        %v2021 = vpop.f32.mrb[0].mxu0
        %v2022 = vpop.f32.mrb[0].mxu0
        %v2023 = vadd.f32 0.0, %v2022
        %v2024 = vpop.f32.mrb[0].mxu0
        %2025 = vmatprep.mubr.bf16.mxu0 0
        %2026 = vmatmul.mubr.bf16.gmra.mrb[0].mxu0 %v1957
        %v2027 = vpop.f32.mrb[0].mxu0
        %v2028 = vadd.f32 0.0, %v2027
        %v2029 = vpop.f32.mrb[0].mxu0
        %v2030 = vpop.f32.mrb[0].mxu0
        %v2031 = vadd.f32 0.0, %v2030
        %v2032 = vpop.f32.mrb[0].mxu0
        %2033 = vmatprep.mubr.bf16.mxu0 0
        %2034 = vmatmul.mubr.bf16.gmra.mrb[0].mxu0 %v1958
        %v2035 = vpop.f32.mrb[0].mxu0
        %v2036 = vadd.f32 0.0, %v2035
        %v2037 = vpop.f32.mrb[0].mxu0
        %v2038 = vpop.f32.mrb[0].mxu0
        %v2039 = vadd.f32 0.0, %v2038
        %v2040 = vpop.f32.mrb[0].mxu0
        %2041 = vmatprep.mubr.bf16.mxu0 0
        %2042 = vmatmul.mubr.bf16.gmra.mrb[0].mxu0 %v1959
        %v2043 = vpop.f32.mrb[0].mxu0
        %v2044 = vadd.f32 0.0, %v2043
        %v2045 = vpop.f32.mrb[0].mxu0
        %v2046 = vpop.f32.mrb[0].mxu0
        %v2047 = vadd.f32 0.0, %v2046
        %v2048 = vpop.f32.mrb[0].mxu0
        %2049 = vmatprep.mubr.bf16.mxu0 0
        %2050 = vmatmul.mubr.bf16.gmra.mrb[0].mxu0 %v1960
        %v2051 = vpop.f32.mrb[0].mxu0
        %v2052 = vadd.f32 0.0, %v2051
        %v2053 = vpop.f32.mrb[0].mxu0
        %v2054 = vpop.f32.mrb[0].mxu0
        %v2055 = vadd.f32 0.0, %v2054
        %v2056 = vpop.f32.mrb[0].mxu0
        %2057 = vdwg.mxu0
        %vm2058 = vcmp.ge.f32.partialorder %v1996, %v605
        %vm2059 = vcmp.ge.f32.partialorder %v1999, %v605
        %vm2060 = vcmp.ge.f32.partialorder %v2004, %v605
        %vm2061 = vcmp.ge.f32.partialorder %v2007, %v605
        %vm2062 = vcmp.ge.f32.partialorder %v2012, %v605
        %vm2063 = vcmp.ge.f32.partialorder %v2015, %v605
        %vm2064 = vcmp.ge.f32.partialorder %v2020, %v605
        %vm2065 = vcmp.ge.f32.partialorder %v2023, %v605
        %vm2066 = vcmp.ge.f32.partialorder %v2028, %v605
        %vm2067 = vcmp.ge.f32.partialorder %v2031, %v605
        %vm2068 = vcmp.ge.f32.partialorder %v2036, %v605
        %vm2069 = vcmp.ge.f32.partialorder %v2039, %v605
        %vm2070 = vcmp.ge.f32.partialorder %v2044, %v605
        %vm2071 = vcmp.ge.f32.partialorder %v2047, %v605
        %vm2072 = vcmp.ge.f32.partialorder %v2052, %v605
        %vm2073 = vcmp.ge.f32.partialorder %v2055, %v605
        %v2074 = vsel %vm2058, %v1843, inf
        %v2075 = vsel %vm2059, %v1847, inf
        %v2076 = vsel %vm2060, %v1851, inf
        %v2077 = vsel %vm2061, %v1855, inf
        %v2078 = vsel %vm2062, %v1859, inf
        %v2079 = vsel %vm2063, %v1863, inf
        %v2080 = vsel %vm2064, %v1867, inf
        %v2081 = vsel %vm2065, %v1871, inf
        %v2082 = vsel %vm2066, %v1875, inf
        %v2083 = vsel %vm2067, %v1879, inf
        %v2084 = vsel %vm2068, %v1883, inf
        %v2085 = vsel %vm2069, %v1887, inf
        %v2086 = vsel %vm2070, %v1891, inf
        %v2087 = vsel %vm2071, %v1895, inf
        %v2088 = vsel %vm2072, %v1899, inf
        %v2089 = vsel %vm2073, %v1903, inf
        %v2090 = vsel %vm639, %v2074, inf
        %v2091 = vsel %vm639, %v2075, inf
        %v2092 = vsel %vm639, %v2076, inf
        %v2093 = vsel %vm639, %v2077, inf
        %v2094 = vsel %vm639, %v2078, inf
        %v2095 = vmin.f32 %v2090, %v2094
        %v2096 = vsel %vm639, %v2079, inf
        %v2097 = vmin.f32 %v2091, %v2096
        %v2098 = vsel %vm639, %v2080, inf
        %v2099 = vmin.f32 %v2092, %v2098
        %v2100 = vsel %vm639, %v2081, inf
        %v2101 = vmin.f32 %v2093, %v2100
        %v2102 = vsel %vm639, %v2082, inf
        %v2103 = vmin.f32 %v2095, %v2102
        %v2104 = vsel %vm639, %v2083, inf
        %v2105 = vmin.f32 %v2097, %v2104
        %v2106 = vsel %vm639, %v2084, inf
        %v2107 = vmin.f32 %v2099, %v2106
        %v2108 = vsel %vm639, %v2085, inf
        %v2109 = vmin.f32 %v2101, %v2108
        %v2110 = vsel %vm639, %v2086, inf
        %v2111 = vmin.f32 %v2103, %v2110
        %v2112 = vsel %vm639, %v2087, inf
        %v2113 = vmin.f32 %v2105, %v2112
        %v2114 = vsel %vm639, %v2088, inf
        %v2115 = vmin.f32 %v2107, %v2114
        %v2116 = vsel %vm639, %v2089, inf
        %v2117 = vmin.f32 %v2109, %v2116
        %v2118 = vmin.f32 %v2111, %v2113
        %v2119 = vmin.f32 %v2115, %v2117
        %v2120 = vmin.f32 %v2118, %v2119
        %v2121 = vrot.slane %v2120, 4
        %v2122 = vmin.f32 %v2120, %v2121
        %v2123 = vrot.slane %v2122, 2
        %v2124 = vmin.f32 %v2122, %v2123
        %v2125 = vrot.slane %v2124, 1
        %v2126 = vmin.f32 %v2124, %v2125
        %v2127 = vlaneseq
        %v2128 = vshrl.u32 %v2127, 7
        %v2129 = vsub.s32 6, %v2128
        %v2130 = vrot.slane %v282, %v2129
        %2131 = vset.pattern.permute.xlu0 6
        %2132 = vperm.xlu0 %2131, %v283
        %v2133 = vpop.permute.xlu0 %2132
        %2135 = vset.pattern.permute.xlu0 6
        %2136 = vperm.xlu0 %2135, %v284
        %v2137 = vpop.permute.xlu0 %2136
        %2139 = vset.pattern.permute.xlu0 6
        %2140 = vperm.xlu0 %2139, %v285
        %v2141 = vpop.permute.xlu0 %2140
        %2143 = vset.pattern.permute.xlu0 6
        %2144 = vperm.xlu0 %2143, %v286
        %v2145 = vpop.permute.xlu0 %2144
        %2147 = vset.pattern.permute.xlu0 6
        %2148 = vperm.xlu0 %2147, %v287
        %v2149 = vpop.permute.xlu0 %2148
        %2151 = vset.pattern.permute.xlu0 6
        %2152 = vperm.xlu0 %2151, %v288
        %v2153 = vpop.permute.xlu0 %2152
        %2155 = vset.pattern.permute.xlu0 6
        %2156 = vperm.xlu0 %2155, %v289
        %v2157 = vpop.permute.xlu0 %2156
        %2159 = vset.pattern.permute.xlu0 6
        %2160 = vperm.xlu0 %2159, %v290
        %v2161 = vpop.permute.xlu0 %2160
        %2163 = vset.pattern.permute.xlu0 6
        %2164 = vperm.xlu0 %2163, %v291
        %v2165 = vpop.permute.xlu0 %2164
        %2167 = vset.pattern.permute.xlu0 6
        %2168 = vperm.xlu0 %2167, %v292
        %v2169 = vpop.permute.xlu0 %2168
        %2171 = vset.pattern.permute.xlu0 6
        %2172 = vperm.xlu0 %2171, %v293
        %v2173 = vpop.permute.xlu0 %2172
        %2175 = vset.pattern.permute.xlu0 6
        %2176 = vperm.xlu0 %2175, %v294
        %v2177 = vpop.permute.xlu0 %2176
        %2179 = vset.pattern.permute.xlu0 6
        %2180 = vperm.xlu0 %2179, %v295
        %v2181 = vpop.permute.xlu0 %2180
        %2183 = vset.pattern.permute.xlu0 6
        %2184 = vperm.xlu0 %2183, %v296
        %v2185 = vpop.permute.xlu0 %2184
        %2187 = vset.pattern.permute.xlu0 6
        %2188 = vperm.xlu0 %2187, %v297
        %v2189 = vpop.permute.xlu0 %2188
        %2191 = vset.pattern.permute.xlu0 6
        %2192 = vperm.xlu0 %2191, %v298
        %v2193 = vpop.permute.xlu0 %2192
        %vm2195 = vcmp.le.f32.partialorder %v2130, %v2133
        %vm2196 = vcmp.le.f32.partialorder %v2130, %v2137
        %vm2197 = vcmp.le.f32.partialorder %v2130, %v2141
        %vm2198 = vcmp.le.f32.partialorder %v2130, %v2145
        %vm2199 = vcmp.le.f32.partialorder %v2130, %v2149
        %vm2200 = vcmp.le.f32.partialorder %v2130, %v2153
        %vm2201 = vcmp.le.f32.partialorder %v2130, %v2157
        %vm2202 = vcmp.le.f32.partialorder %v2130, %v2161
        %vm2203 = vcmp.le.f32.partialorder %v2130, %v2165
        %vm2204 = vcmp.le.f32.partialorder %v2130, %v2169
        %vm2205 = vcmp.le.f32.partialorder %v2130, %v2173
        %vm2206 = vcmp.le.f32.partialorder %v2130, %v2177
        %vm2207 = vcmp.le.f32.partialorder %v2130, %v2181
        %vm2208 = vcmp.le.f32.partialorder %v2130, %v2185
        %vm2209 = vcmp.le.f32.partialorder %v2130, %v2189
        %vm2210 = vcmp.le.f32.partialorder %v2130, %v2193
        %v2211 = vsel %vm2195, 1, 0
        %v2212 = vsel %vm2196, 1, 0
        %v2213 = vsel %vm2197, 1, 0
        %v2214 = vsel %vm2198, 1, 0
        %v2215 = vsel %vm2199, 1, 0
        %v2216 = vsel %vm2200, 1, 0
        %v2217 = vsel %vm2201, 1, 0
        %v2218 = vsel %vm2202, 1, 0
        %v2219 = vsel %vm2203, 1, 0
        %v2220 = vsel %vm2204, 1, 0
        %v2221 = vsel %vm2205, 1, 0
        %v2222 = vsel %vm2206, 1, 0
        %v2223 = vsel %vm2207, 1, 0
        %v2224 = vsel %vm2208, 1, 0
        %v2225 = vsel %vm2209, 1, 0
        %v2226 = vsel %vm2210, 1, 0
        %v2227 = vcvt.s32.f32 %v2211
        %v2228 = vcvt.s32.f32 %v2212
        %v2229 = vcvt.s32.f32 %v2213
        %v2230 = vcvt.s32.f32 %v2214
        %v2231 = vcvt.s32.f32 %v2215
        %v2232 = vcvt.s32.f32 %v2216
        %v2233 = vcvt.s32.f32 %v2217
        %v2234 = vcvt.s32.f32 %v2218
        %v2235 = vcvt.s32.f32 %v2219
        %v2236 = vcvt.s32.f32 %v2220
        %v2237 = vcvt.s32.f32 %v2221
        %v2238 = vcvt.s32.f32 %v2222
        %v2239 = vcvt.s32.f32 %v2223
        %v2240 = vcvt.s32.f32 %v2224
        %v2241 = vcvt.s32.f32 %v2225
        %v2242 = vcvt.s32.f32 %v2226
        %v2243 = vpack.c.bf16 %v2228, %v2227
        %v2244 = vpack.c.bf16 %v2230, %v2229
        %v2245 = vpack.c.bf16 %v2232, %v2231
        %v2246 = vpack.c.bf16 %v2234, %v2233
        %v2247 = vpack.c.bf16 %v2236, %v2235
        %v2248 = vpack.c.bf16 %v2238, %v2237
        %v2249 = vpack.c.bf16 %v2240, %v2239
        %v2250 = vpack.c.bf16 %v2242, %v2241
        %2251 = vmatprep.subr.bf16.mxu0 0
        %2252 = vmatpush1.bf16.msra.mxu0 %v488
        %2253 = vmatprep.subr.bf16.mxu0 0
        %2254 = vmatpush1.bf16.msra.mxu0 %v489
        %2255 = vmatprep.subr.bf16.mxu0 0
        %2256 = vmatpush1.bf16.msra.mxu0 %v490
        %2257 = vmatprep.subr.bf16.mxu0 0
        %2258 = vmatpush1.bf16.msra.mxu0 %v491
        %2259 = vmatprep.subr.bf16.mxu0 0
        %2260 = vmatpush1.bf16.msra.mxu0 %v492
        %2261 = vmatprep.subr.bf16.mxu0 0
        %2262 = vmatpush1.bf16.msra.mxu0 %v493
        %2263 = vmatprep.subr.bf16.mxu0 0
        %2264 = vmatpush1.bf16.msra.mxu0 %v494
        %2265 = vmatprep.subr.bf16.mxu0 0
        %2266 = vmatpush1.bf16.msra.mxu0 %v495
        %2267 = vmatprep.subr.bf16.mxu0 0
        %2268 = vmatpush1.bf16.msra.mxu0 0
        %2269 = vmatprep.subr.bf16.mxu0 0
        %2270 = vmatpush1.bf16.msra.mxu0 0
        %2271 = vmatprep.subr.bf16.mxu0 0
        %2272 = vmatpush1.bf16.msra.mxu0 0
        %2273 = vmatprep.subr.bf16.mxu0 0
        %2274 = vmatpush1.bf16.msra.mxu0 0
        %2275 = vmatprep.subr.bf16.mxu0 0
        %2276 = vmatpush1.bf16.msra.mxu0 0
        %2277 = vmatprep.subr.bf16.mxu0 0
        %2278 = vmatpush1.bf16.msra.mxu0 0
        %2279 = vmatprep.subr.bf16.mxu0 0
        %2280 = vmatpush1.bf16.msra.mxu0 0
        %2281 = vmatprep.subr.bf16.mxu0 0
        %2282 = vmatpush1.bf16.msra.mxu0 0
        %2283 = vmatprep.mubr.bf16.mxu0 0
        %2284 = vmatmul.mubr.bf16.gmra.mrb[0].mxu0 %v2243
        %v2285 = vpop.f32.mrb[0].mxu0
        %v2286 = vadd.f32 0.0, %v2285
        %v2287 = vpop.f32.mrb[0].mxu0
        %v2288 = vpop.f32.mrb[0].mxu0
        %v2289 = vadd.f32 0.0, %v2288
        %v2290 = vpop.f32.mrb[0].mxu0
        %2291 = vmatprep.mubr.bf16.mxu0 0
        %2292 = vmatmul.mubr.bf16.gmra.mrb[0].mxu0 %v2244
        %v2293 = vpop.f32.mrb[0].mxu0
        %v2294 = vadd.f32 0.0, %v2293
        %v2295 = vpop.f32.mrb[0].mxu0
        %v2296 = vpop.f32.mrb[0].mxu0
        %v2297 = vadd.f32 0.0, %v2296
        %v2298 = vpop.f32.mrb[0].mxu0
        %2299 = vmatprep.mubr.bf16.mxu0 0
        %2300 = vmatmul.mubr.bf16.gmra.mrb[0].mxu0 %v2245
        %v2301 = vpop.f32.mrb[0].mxu0
        %v2302 = vadd.f32 0.0, %v2301
        %v2303 = vpop.f32.mrb[0].mxu0
        %v2304 = vpop.f32.mrb[0].mxu0
        %v2305 = vadd.f32 0.0, %v2304
        %v2306 = vpop.f32.mrb[0].mxu0
        %2307 = vmatprep.mubr.bf16.mxu0 0
        %2308 = vmatmul.mubr.bf16.gmra.mrb[0].mxu0 %v2246
        %v2309 = vpop.f32.mrb[0].mxu0
        %v2310 = vadd.f32 0.0, %v2309
        %v2311 = vpop.f32.mrb[0].mxu0
        %v2312 = vpop.f32.mrb[0].mxu0
        %v2313 = vadd.f32 0.0, %v2312
        %v2314 = vpop.f32.mrb[0].mxu0
        %2315 = vmatprep.mubr.bf16.mxu0 0
        %2316 = vmatmul.mubr.bf16.gmra.mrb[0].mxu0 %v2247
        %v2317 = vpop.f32.mrb[0].mxu0
        %v2318 = vadd.f32 0.0, %v2317
        %v2319 = vpop.f32.mrb[0].mxu0
        %v2320 = vpop.f32.mrb[0].mxu0
        %v2321 = vadd.f32 0.0, %v2320
        %v2322 = vpop.f32.mrb[0].mxu0
        %2323 = vmatprep.mubr.bf16.mxu0 0
        %2324 = vmatmul.mubr.bf16.gmra.mrb[0].mxu0 %v2248
        %v2325 = vpop.f32.mrb[0].mxu0
        %v2326 = vadd.f32 0.0, %v2325
        %v2327 = vpop.f32.mrb[0].mxu0
        %v2328 = vpop.f32.mrb[0].mxu0
        %v2329 = vadd.f32 0.0, %v2328
        %v2330 = vpop.f32.mrb[0].mxu0
        %2331 = vmatprep.mubr.bf16.mxu0 0
        %2332 = vmatmul.mubr.bf16.gmra.mrb[0].mxu0 %v2249
        %v2333 = vpop.f32.mrb[0].mxu0
        %v2334 = vadd.f32 0.0, %v2333
        %v2335 = vpop.f32.mrb[0].mxu0
        %v2336 = vpop.f32.mrb[0].mxu0
        %v2337 = vadd.f32 0.0, %v2336
        %v2338 = vpop.f32.mrb[0].mxu0
        %2339 = vmatprep.mubr.bf16.mxu0 0
        %2340 = vmatmul.mubr.bf16.gmra.mrb[0].mxu0 %v2250
        %v2341 = vpop.f32.mrb[0].mxu0
        %v2342 = vadd.f32 0.0, %v2341
        %v2343 = vpop.f32.mrb[0].mxu0
        %v2344 = vpop.f32.mrb[0].mxu0
        %v2345 = vadd.f32 0.0, %v2344
        %v2346 = vpop.f32.mrb[0].mxu0
        %2347 = vdwg.mxu0
        %vm2348 = vcmp.ge.f32.partialorder %v2286, %v605
        %vm2349 = vcmp.ge.f32.partialorder %v2289, %v605
        %vm2350 = vcmp.ge.f32.partialorder %v2294, %v605
        %vm2351 = vcmp.ge.f32.partialorder %v2297, %v605
        %vm2352 = vcmp.ge.f32.partialorder %v2302, %v605
        %vm2353 = vcmp.ge.f32.partialorder %v2305, %v605
        %vm2354 = vcmp.ge.f32.partialorder %v2310, %v605
        %vm2355 = vcmp.ge.f32.partialorder %v2313, %v605
        %vm2356 = vcmp.ge.f32.partialorder %v2318, %v605
        %vm2357 = vcmp.ge.f32.partialorder %v2321, %v605
        %vm2358 = vcmp.ge.f32.partialorder %v2326, %v605
        %vm2359 = vcmp.ge.f32.partialorder %v2329, %v605
        %vm2360 = vcmp.ge.f32.partialorder %v2334, %v605
        %vm2361 = vcmp.ge.f32.partialorder %v2337, %v605
        %vm2362 = vcmp.ge.f32.partialorder %v2342, %v605
        %vm2363 = vcmp.ge.f32.partialorder %v2345, %v605
        %v2364 = vsel %vm2348, %v2133, inf
        %v2365 = vsel %vm2349, %v2137, inf
        %v2366 = vsel %vm2350, %v2141, inf
        %v2367 = vsel %vm2351, %v2145, inf
        %v2368 = vsel %vm2352, %v2149, inf
        %v2369 = vsel %vm2353, %v2153, inf
        %v2370 = vsel %vm2354, %v2157, inf
        %v2371 = vsel %vm2355, %v2161, inf
        %v2372 = vsel %vm2356, %v2165, inf
        %v2373 = vsel %vm2357, %v2169, inf
        %v2374 = vsel %vm2358, %v2173, inf
        %v2375 = vsel %vm2359, %v2177, inf
        %v2376 = vsel %vm2360, %v2181, inf
        %v2377 = vsel %vm2361, %v2185, inf
        %v2378 = vsel %vm2362, %v2189, inf
        %v2379 = vsel %vm2363, %v2193, inf
        %v2380 = vsel %vm639, %v2364, inf
        %v2381 = vsel %vm639, %v2365, inf
        %v2382 = vsel %vm639, %v2366, inf
        %v2383 = vsel %vm639, %v2367, inf
        %v2384 = vsel %vm639, %v2368, inf
        %v2385 = vmin.f32 %v2380, %v2384
        %v2386 = vsel %vm639, %v2369, inf
        %v2387 = vmin.f32 %v2381, %v2386
        %v2388 = vsel %vm639, %v2370, inf
        %v2389 = vmin.f32 %v2382, %v2388
        %v2390 = vsel %vm639, %v2371, inf
        %v2391 = vmin.f32 %v2383, %v2390
        %v2392 = vsel %vm639, %v2372, inf
        %v2393 = vmin.f32 %v2385, %v2392
        %v2394 = vsel %vm639, %v2373, inf
        %v2395 = vmin.f32 %v2387, %v2394
        %v2396 = vsel %vm639, %v2374, inf
        %v2397 = vmin.f32 %v2389, %v2396
        %v2398 = vsel %vm639, %v2375, inf
        %v2399 = vmin.f32 %v2391, %v2398
        %v2400 = vsel %vm639, %v2376, inf
        %v2401 = vmin.f32 %v2393, %v2400
        %v2402 = vsel %vm639, %v2377, inf
        %v2403 = vmin.f32 %v2395, %v2402
        %v2404 = vsel %vm639, %v2378, inf
        %v2405 = vmin.f32 %v2397, %v2404
        %v2406 = vsel %vm639, %v2379, inf
        %v2407 = vmin.f32 %v2399, %v2406
        %v2408 = vmin.f32 %v2401, %v2403
        %v2409 = vmin.f32 %v2405, %v2407
        %v2410 = vmin.f32 %v2408, %v2409
        %v2411 = vrot.slane %v2410, 4
        %v2412 = vmin.f32 %v2410, %v2411
        %v2413 = vrot.slane %v2412, 2
        %v2414 = vmin.f32 %v2412, %v2413
        %v2415 = vrot.slane %v2414, 1
        %v2416 = vmin.f32 %v2414, %v2415
        %v2417 = vlaneseq
        %v2418 = vshrl.u32 %v2417, 7
        %v2419 = vsub.s32 7, %v2418
        %v2420 = vrot.slane %v282, %v2419
        %2421 = vset.pattern.permute.xlu0 7
        %2422 = vperm.xlu0 %2421, %v283
        %v2423 = vpop.permute.xlu0 %2422
        %2425 = vset.pattern.permute.xlu0 7
        %2426 = vperm.xlu0 %2425, %v284
        %v2427 = vpop.permute.xlu0 %2426
        %2429 = vset.pattern.permute.xlu0 7
        %2430 = vperm.xlu0 %2429, %v285
        %v2431 = vpop.permute.xlu0 %2430
        %2433 = vset.pattern.permute.xlu0 7
        %2434 = vperm.xlu0 %2433, %v286
        %v2435 = vpop.permute.xlu0 %2434
        %2437 = vset.pattern.permute.xlu0 7
        %2438 = vperm.xlu0 %2437, %v287
        %v2439 = vpop.permute.xlu0 %2438
        %2441 = vset.pattern.permute.xlu0 7
        %2442 = vperm.xlu0 %2441, %v288
        %v2443 = vpop.permute.xlu0 %2442
        %2445 = vset.pattern.permute.xlu0 7
        %2446 = vperm.xlu0 %2445, %v289
        %v2447 = vpop.permute.xlu0 %2446
        %2449 = vset.pattern.permute.xlu0 7
        %2450 = vperm.xlu0 %2449, %v290
        %v2451 = vpop.permute.xlu0 %2450
        %2453 = vset.pattern.permute.xlu0 7
        %2454 = vperm.xlu0 %2453, %v291
        %v2455 = vpop.permute.xlu0 %2454
        %2457 = vset.pattern.permute.xlu0 7
        %2458 = vperm.xlu0 %2457, %v292
        %v2459 = vpop.permute.xlu0 %2458
        %2461 = vset.pattern.permute.xlu0 7
        %2462 = vperm.xlu0 %2461, %v293
        %v2463 = vpop.permute.xlu0 %2462
        %2465 = vset.pattern.permute.xlu0 7
        %2466 = vperm.xlu0 %2465, %v294
        %v2467 = vpop.permute.xlu0 %2466
        %2469 = vset.pattern.permute.xlu0 7
        %2470 = vperm.xlu0 %2469, %v295
        %v2471 = vpop.permute.xlu0 %2470
        %2473 = vset.pattern.permute.xlu0 7
        %2474 = vperm.xlu0 %2473, %v296
        %v2475 = vpop.permute.xlu0 %2474
        %2477 = vset.pattern.permute.xlu0 7
        %2478 = vperm.xlu0 %2477, %v297
        %v2479 = vpop.permute.xlu0 %2478
        %2481 = vset.pattern.permute.xlu0 7
        %2482 = vperm.xlu0 %2481, %v298
        %v2483 = vpop.permute.xlu0 %2482
        %vm2485 = vcmp.le.f32.partialorder %v2420, %v2423
        %vm2486 = vcmp.le.f32.partialorder %v2420, %v2427
        %vm2487 = vcmp.le.f32.partialorder %v2420, %v2431
        %vm2488 = vcmp.le.f32.partialorder %v2420, %v2435
        %vm2489 = vcmp.le.f32.partialorder %v2420, %v2439
        %vm2490 = vcmp.le.f32.partialorder %v2420, %v2443
        %vm2491 = vcmp.le.f32.partialorder %v2420, %v2447
        %vm2492 = vcmp.le.f32.partialorder %v2420, %v2451
        %vm2493 = vcmp.le.f32.partialorder %v2420, %v2455
        %vm2494 = vcmp.le.f32.partialorder %v2420, %v2459
        %vm2495 = vcmp.le.f32.partialorder %v2420, %v2463
        %vm2496 = vcmp.le.f32.partialorder %v2420, %v2467
        %vm2497 = vcmp.le.f32.partialorder %v2420, %v2471
        %vm2498 = vcmp.le.f32.partialorder %v2420, %v2475
        %vm2499 = vcmp.le.f32.partialorder %v2420, %v2479
        %vm2500 = vcmp.le.f32.partialorder %v2420, %v2483
        %v2501 = vsel %vm2485, 1, 0
        %v2502 = vsel %vm2486, 1, 0
        %v2503 = vsel %vm2487, 1, 0
        %v2504 = vsel %vm2488, 1, 0
        %v2505 = vsel %vm2489, 1, 0
        %v2506 = vsel %vm2490, 1, 0
        %v2507 = vsel %vm2491, 1, 0
        %v2508 = vsel %vm2492, 1, 0
        %v2509 = vsel %vm2493, 1, 0
        %v2510 = vsel %vm2494, 1, 0
        %v2511 = vsel %vm2495, 1, 0
        %v2512 = vsel %vm2496, 1, 0
        %v2513 = vsel %vm2497, 1, 0
        %v2514 = vsel %vm2498, 1, 0
        %v2515 = vsel %vm2499, 1, 0
        %v2516 = vsel %vm2500, 1, 0
        %v2517 = vcvt.s32.f32 %v2501
        %v2518 = vcvt.s32.f32 %v2502
        %v2519 = vcvt.s32.f32 %v2503
        %v2520 = vcvt.s32.f32 %v2504
        %v2521 = vcvt.s32.f32 %v2505
        %v2522 = vcvt.s32.f32 %v2506
        %v2523 = vcvt.s32.f32 %v2507
        %v2524 = vcvt.s32.f32 %v2508
        %v2525 = vcvt.s32.f32 %v2509
        %v2526 = vcvt.s32.f32 %v2510
        %v2527 = vcvt.s32.f32 %v2511
        %v2528 = vcvt.s32.f32 %v2512
        %v2529 = vcvt.s32.f32 %v2513
        %v2530 = vcvt.s32.f32 %v2514
        %v2531 = vcvt.s32.f32 %v2515
        %v2532 = vcvt.s32.f32 %v2516
        %v2533 = vpack.c.bf16 %v2518, %v2517
        %v2534 = vpack.c.bf16 %v2520, %v2519
        %v2535 = vpack.c.bf16 %v2522, %v2521
        %v2536 = vpack.c.bf16 %v2524, %v2523
        %v2537 = vpack.c.bf16 %v2526, %v2525
        %v2538 = vpack.c.bf16 %v2528, %v2527
        %v2539 = vpack.c.bf16 %v2530, %v2529
        %v2540 = vpack.c.bf16 %v2532, %v2531
        %2541 = vmatprep.subr.bf16.mxu0 0
        %2542 = vmatpush1.bf16.msra.mxu0 %v488
        %2543 = vmatprep.subr.bf16.mxu0 0
        %2544 = vmatpush1.bf16.msra.mxu0 %v489
        %2545 = vmatprep.subr.bf16.mxu0 0
        %2546 = vmatpush1.bf16.msra.mxu0 %v490
        %2547 = vmatprep.subr.bf16.mxu0 0
        %2548 = vmatpush1.bf16.msra.mxu0 %v491
        %2549 = vmatprep.subr.bf16.mxu0 0
        %2550 = vmatpush1.bf16.msra.mxu0 %v492
        %2551 = vmatprep.subr.bf16.mxu0 0
        %2552 = vmatpush1.bf16.msra.mxu0 %v493
        %2553 = vmatprep.subr.bf16.mxu0 0
        %2554 = vmatpush1.bf16.msra.mxu0 %v494
        %2555 = vmatprep.subr.bf16.mxu0 0
        %2556 = vmatpush1.bf16.msra.mxu0 %v495
        %2557 = vmatprep.subr.bf16.mxu0 0
        %2558 = vmatpush1.bf16.msra.mxu0 0
        %2559 = vmatprep.subr.bf16.mxu0 0
        %2560 = vmatpush1.bf16.msra.mxu0 0
        %2561 = vmatprep.subr.bf16.mxu0 0
        %2562 = vmatpush1.bf16.msra.mxu0 0
        %2563 = vmatprep.subr.bf16.mxu0 0
        %2564 = vmatpush1.bf16.msra.mxu0 0
        %2565 = vmatprep.subr.bf16.mxu0 0
        %2566 = vmatpush1.bf16.msra.mxu0 0
        %2567 = vmatprep.subr.bf16.mxu0 0
        %2568 = vmatpush1.bf16.msra.mxu0 0
        %2569 = vmatprep.subr.bf16.mxu0 0
        %2570 = vmatpush1.bf16.msra.mxu0 0
        %2571 = vmatprep.subr.bf16.mxu0 0
        %2572 = vmatpush1.bf16.msra.mxu0 0
        %2573 = vmatprep.mubr.bf16.mxu0 0
        %2574 = vmatmul.mubr.bf16.gmra.mrb[0].mxu0 %v2533
        %v2575 = vpop.f32.mrb[0].mxu0
        %v2576 = vadd.f32 0.0, %v2575
        %v2577 = vpop.f32.mrb[0].mxu0
        %v2578 = vpop.f32.mrb[0].mxu0
        %v2579 = vadd.f32 0.0, %v2578
        %v2580 = vpop.f32.mrb[0].mxu0
        %2581 = vmatprep.mubr.bf16.mxu0 0
        %2582 = vmatmul.mubr.bf16.gmra.mrb[0].mxu0 %v2534
        %v2583 = vpop.f32.mrb[0].mxu0
        %v2584 = vadd.f32 0.0, %v2583
        %v2585 = vpop.f32.mrb[0].mxu0
        %v2586 = vpop.f32.mrb[0].mxu0
        %v2587 = vadd.f32 0.0, %v2586
        %v2588 = vpop.f32.mrb[0].mxu0
        %2589 = vmatprep.mubr.bf16.mxu0 0
        %2590 = vmatmul.mubr.bf16.gmra.mrb[0].mxu0 %v2535
        %v2591 = vpop.f32.mrb[0].mxu0
        %v2592 = vadd.f32 0.0, %v2591
        %v2593 = vpop.f32.mrb[0].mxu0
        %v2594 = vpop.f32.mrb[0].mxu0
        %v2595 = vadd.f32 0.0, %v2594
        %v2596 = vpop.f32.mrb[0].mxu0
        %2597 = vmatprep.mubr.bf16.mxu0 0
        %2598 = vmatmul.mubr.bf16.gmra.mrb[0].mxu0 %v2536
        %v2599 = vpop.f32.mrb[0].mxu0
        %v2600 = vadd.f32 0.0, %v2599
        %v2601 = vpop.f32.mrb[0].mxu0
        %v2602 = vpop.f32.mrb[0].mxu0
        %v2603 = vadd.f32 0.0, %v2602
        %v2604 = vpop.f32.mrb[0].mxu0
        %2605 = vmatprep.mubr.bf16.mxu0 0
        %2606 = vmatmul.mubr.bf16.gmra.mrb[0].mxu0 %v2537
        %v2607 = vpop.f32.mrb[0].mxu0
        %v2608 = vadd.f32 0.0, %v2607
        %v2609 = vpop.f32.mrb[0].mxu0
        %v2610 = vpop.f32.mrb[0].mxu0
        %v2611 = vadd.f32 0.0, %v2610
        %v2612 = vpop.f32.mrb[0].mxu0
        %2613 = vmatprep.mubr.bf16.mxu0 0
        %2614 = vmatmul.mubr.bf16.gmra.mrb[0].mxu0 %v2538
        %v2615 = vpop.f32.mrb[0].mxu0
        %v2616 = vadd.f32 0.0, %v2615
        %v2617 = vpop.f32.mrb[0].mxu0
        %v2618 = vpop.f32.mrb[0].mxu0
        %v2619 = vadd.f32 0.0, %v2618
        %v2620 = vpop.f32.mrb[0].mxu0
        %2621 = vmatprep.mubr.bf16.mxu0 0
        %2622 = vmatmul.mubr.bf16.gmra.mrb[0].mxu0 %v2539
        %v2623 = vpop.f32.mrb[0].mxu0
        %v2624 = vadd.f32 0.0, %v2623
        %v2625 = vpop.f32.mrb[0].mxu0
        %v2626 = vpop.f32.mrb[0].mxu0
        %v2627 = vadd.f32 0.0, %v2626
        %v2628 = vpop.f32.mrb[0].mxu0
        %2629 = vmatprep.mubr.bf16.mxu0 0
        %2630 = vmatmul.mubr.bf16.gmra.mrb[0].mxu0 %v2540
        %v2631 = vpop.f32.mrb[0].mxu0
        %v2632 = vadd.f32 0.0, %v2631
        %v2633 = vpop.f32.mrb[0].mxu0
        %v2634 = vpop.f32.mrb[0].mxu0
        %v2635 = vadd.f32 0.0, %v2634
        %v2636 = vpop.f32.mrb[0].mxu0
        %2637 = vdwg.mxu0
        %vm2638 = vcmp.ge.f32.partialorder %v2576, %v605
        %vm2639 = vcmp.ge.f32.partialorder %v2579, %v605
        %vm2640 = vcmp.ge.f32.partialorder %v2584, %v605
        %vm2641 = vcmp.ge.f32.partialorder %v2587, %v605
        %vm2642 = vcmp.ge.f32.partialorder %v2592, %v605
        %vm2643 = vcmp.ge.f32.partialorder %v2595, %v605
        %vm2644 = vcmp.ge.f32.partialorder %v2600, %v605
        %vm2645 = vcmp.ge.f32.partialorder %v2603, %v605
        %vm2646 = vcmp.ge.f32.partialorder %v2608, %v605
        %vm2647 = vcmp.ge.f32.partialorder %v2611, %v605
        %vm2648 = vcmp.ge.f32.partialorder %v2616, %v605
        %vm2649 = vcmp.ge.f32.partialorder %v2619, %v605
        %vm2650 = vcmp.ge.f32.partialorder %v2624, %v605
        %vm2651 = vcmp.ge.f32.partialorder %v2627, %v605
        %vm2652 = vcmp.ge.f32.partialorder %v2632, %v605
        %vm2653 = vcmp.ge.f32.partialorder %v2635, %v605
        %v2654 = vsel %vm2638, %v2423, inf
        %v2655 = vsel %vm2639, %v2427, inf
        %v2656 = vsel %vm2640, %v2431, inf
        %v2657 = vsel %vm2641, %v2435, inf
        %v2658 = vsel %vm2642, %v2439, inf
        %v2659 = vsel %vm2643, %v2443, inf
        %v2660 = vsel %vm2644, %v2447, inf
        %v2661 = vsel %vm2645, %v2451, inf
        %v2662 = vsel %vm2646, %v2455, inf
        %v2663 = vsel %vm2647, %v2459, inf
        %v2664 = vsel %vm2648, %v2463, inf
        %v2665 = vsel %vm2649, %v2467, inf
        %v2666 = vsel %vm2650, %v2471, inf
        %v2667 = vsel %vm2651, %v2475, inf
        %v2668 = vsel %vm2652, %v2479, inf
        %v2669 = vsel %vm2653, %v2483, inf
        %v2670 = vsel %vm639, %v2654, inf
        %v2671 = vsel %vm639, %v2655, inf
        %v2672 = vsel %vm639, %v2656, inf
        %v2673 = vsel %vm639, %v2657, inf
        %v2674 = vsel %vm639, %v2658, inf
        %v2675 = vmin.f32 %v2670, %v2674
        %v2676 = vsel %vm639, %v2659, inf
        %v2677 = vmin.f32 %v2671, %v2676
        %v2678 = vsel %vm639, %v2660, inf
        %v2679 = vmin.f32 %v2672, %v2678
        %v2680 = vsel %vm639, %v2661, inf
        %v2681 = vmin.f32 %v2673, %v2680
        %v2682 = vsel %vm639, %v2662, inf
        %v2683 = vmin.f32 %v2675, %v2682
        %v2684 = vsel %vm639, %v2663, inf
        %v2685 = vmin.f32 %v2677, %v2684
        %v2686 = vsel %vm639, %v2664, inf
        %v2687 = vmin.f32 %v2679, %v2686
        %v2688 = vsel %vm639, %v2665, inf
        %v2689 = vmin.f32 %v2681, %v2688
        %v2690 = vsel %vm639, %v2666, inf
        %v2691 = vmin.f32 %v2683, %v2690
        %v2692 = vsel %vm639, %v2667, inf
        %v2693 = vmin.f32 %v2685, %v2692
        %v2694 = vsel %vm639, %v2668, inf
        %v2695 = vmin.f32 %v2687, %v2694
        %v2696 = vsel %vm639, %v2669, inf
        %v2697 = vmin.f32 %v2689, %v2696
        %v2698 = vmin.f32 %v2691, %v2693
        %v2699 = vmin.f32 %v2695, %v2697
        %v2700 = vmin.f32 %v2698, %v2699
        %v2701 = vrot.slane %v2700, 4
        %v2702 = vmin.f32 %v2700, %v2701
        %v2703 = vrot.slane %v2702, 2
        %v2704 = vmin.f32 %v2702, %v2703
        %v2705 = vrot.slane %v2704, 1
        %v2706 = vmin.f32 %v2704, %v2705
        %v2707 = vld [vmem:[%s253] sm:$0xff]
        %vm2708 = vcmask 1040384
        %v2709 = vsel %vm2708, %v676, %v966
        %vm2710 = vcmask 1041408
        %v2711 = vsel %vm2710, %v2709, %v1256
        %vm2712 = vcmask 1042432
        %v2713 = vsel %vm2712, %v2711, %v1546
        %vm2714 = vcmask 1043456
        %v2715 = vsel %vm2714, %v2713, %v1836
        %vm2716 = vcmask 1044480
        %v2717 = vsel %vm2716, %v2715, %v2126
        %vm2718 = vcmask 1045504
        %v2719 = vsel %vm2718, %v2717, %v2416
        %vm2720 = vcmask 1046528
        %v2721 = vsel %vm2720, %v2719, %v2706
        %v2722 = vmin.f32 %v2707, %v2721
        %2723 = vst.msk [vmem:[%s253] sm:$0xff] %vm639, %v2722
        // Predicated region
        $region41: #{tpu_custom_call.1} parent=35 // pred_check
          %p2724 = pneg %p276
        $region42: #{tpu_custom_call.1} parent=35 // pred_check_branch
          %2726 = sbr.rel (%p2724) target = $region44
        $region43: #{tpu_custom_call.1} parent=35 // pred_region
          %v2727 = vld [vmem:[%s253] sm:$0xff]
          %v2728 = vmul.f32 %v2727, 0.15811388
          %2729 = vst.msk [vmem:[%s253] sm:$0xff] %vm639, %v2728
        $region44: #{tpu_custom_call.1} parent=35 // pred_fallthru
          _
        %s2730 = sand.u32 %s147, 1
        %s2731 = scalar_lea.sflag [#allocation3], %s2730
        %s2732 = sand.u32 %s147, 1
        %s2733 = smul.addr %s2732, 8
        %s2734 = scalar_lea.vmem [#allocation2], %s2733
        // Predicated region
        $region45: #{tpu_custom_call.1} parent=35 // pred_check
          %p2735 = pneg %p157
        $region46: #{tpu_custom_call.1} parent=35 // pred_check_branch
          %2737 = sbr.rel (%p2735) target = $region48
        $region47: #{tpu_custom_call.1} parent=35 // pred_region
          %s2739 = ssub.s32 128, 128
          %2740 = vsyncadd %s2731, %s2739
          %s2741 = sadd.s32 %s24, %s23
          %s2742 = smul.addr %s2741, 128
          %s2743 = scalar_lea.hbm %s4, %s2742
          %s2745 = sshll.u32 %s2734, 4
          %s2746 = int_to_ptr.vmem [resolvable:$true] %s2745
          %2748 = dma.vmem_to_hbm [thread:$0]  %s2746, 128, %s2743, %s2731
        $region48: #{tpu_custom_call.1} parent=35 // pred_fallthru
          _
      $region36: #{tpu_custom_call.1} parent=5 // pred_fallthru
        _
      %p2749 = scmp.le.s32.totalorder 2, %s13
      // Predicated region
      $region49: #{tpu_custom_call.1} parent=5 // pred_check
        %p2750 = pneg %p2749
      $region50: #{tpu_custom_call.1} parent=5 // pred_check_branch
        %2752 = sbr.rel (%p2750) target = $region52
      $region51: #{tpu_custom_call.1} parent=5 // pred_region
        %s2753 = ssub.s32 %s13, 2
        // Predicated region
        $region53: #{tpu_custom_call.1} parent=51 // pred_check
          %p2754 = pneg %p163
        $region54: #{tpu_custom_call.1} parent=51 // pred_check_branch
          %2756 = sbr.rel (%p2754) target = $region56
        $region55: #{tpu_custom_call.1} parent=51 // pred_region
          %s2757 = sand.u32 %s148, 1
          %s2758 = scalar_lea.sflag [#allocation3], %s2757
          %s2759 = sand.u32 %s148, 1
          %s2760 = smul.addr %s2759, 8
          %s2761 = scalar_lea.vmem [#allocation2], %s2760
          %2762 = dma.done %s2758, 128
        $region56: #{tpu_custom_call.1} parent=51 // pred_fallthru
          _
      $region52: #{tpu_custom_call.1} parent=5 // pred_fallthru
        _
    $region6: #{tpu_custom_call.1} parent=1 // loop_footer
      %s17 = sadd.s32 1, %s13
    $region7: #{tpu_custom_call.1} parent=1 // loop_footer_branch
      %12 = sbr.rel target = $region3
    $region8: #{tpu_custom_call.1} parent=1 // loop_exit
      _
    %2763 = vsyncpa [#allocation3], 1
    %s2764 = scalar_lea.sflag [#allocation3], 1
    %2765 = vsyncpa %s2764, 1

</llo_original>
